<compile_context>
chip_gen: v6e
topology: v6e:2x2x1
jax: 0.10.0
libtpu: 0.0.40
codegen_flags: <defaults>
</compile_context>

<pallas_src>
import jax
import jax.numpy as jnp
from jax.experimental import pallas as pl
from jax.experimental.pallas import tpu as pltpu


_MIN_PALLAS_BYTES = 1 << 20  # below this, pallas_call fixed overhead dominates


def _andor_kernel(x1_ref, x2_ref, and_ref, or_ref):
    # Pure VALU elementwise body (1 vmul + 1 vadd + 1 vsub per vreg); the
    # kernel is HBM-bandwidth bound, so all perf comes from tiling/layout.
    x1 = x1_ref[...].astype(jnp.float32)
    x2 = x2_ref[...].astype(jnp.float32)
    prod = x1 * x2
    and_ref[...] = prod.astype(and_ref.dtype)
    or_ref[...] = (x1 + x2 - prod).astype(or_ref.dtype)


def _cdiv(a: int, b: int) -> int:
    return -(-a // b)


def _round_up(x: int, m: int) -> int:
    return ((x + m - 1) // m) * m


def _sublane_multiple(dtype) -> int:
    """Native sublane packing: 8 for 32-bit, 16 for 16-bit, 32 for 8-bit."""
    bits = jnp.dtype(dtype).itemsize * 8
    if bits >= 32:
        return 8
    if bits == 16:
        return 16
    return 32


def _vmem_capacity_bytes() -> int:
    """Per-TensorCore VMEM; conservative (v7x = 64 MiB) if query unavailable."""
    try:
        cap = int(getattr(pltpu.get_tpu_info(), "vmem_capacity_bytes", 0))
        if cap > 0:
            return cap
    except Exception:
        pass
    return 64 << 20


def _lane_dense_view(shape, total: int):
    """Pick a 2-D (rows, cols) view of the flattened array.

    Prefer a lane-dense cols (multiple of 128) so output stores are unmasked;
    fall back to the original trailing dim only when the total is indivisible.
    """
    for cols in (1024, 512, 256, 128):
        if total % cols == 0:
            return total // cols, cols
    last = shape[-1] if len(shape) >= 2 else total
    return total // last, last


def _choose_tiles(B: int, N: int, dtype_bytes: int, sub: int,
                  target_bytes: int, min_steps: int):
    """Pick a (rows, cols) block ~target_bytes per array, lane-dense last dim,
    with at least `min_steps` grid steps when the data allows it."""
    target_elems = max(sub * 128, target_bytes // dtype_bytes)

    # Lane (last) dim: full dim unless it is a large multiple of 128.
    if N < 256 or N % 128 != 0:
        tile_cols = N                       # full dim is always legal
    else:
        max_cols = max(128, (target_elems // sub) // 128 * 128)
        tile_cols = min(N, max_cols)

    # Sublane (row) dim: fill the remaining budget, dtype-packed multiple.
    tile_rows = min(B, max(sub, (target_elems // max(tile_cols, 1)) // sub * sub))

    # Guarantee enough grid steps for DMA pipelining / 2-TC (v7x) sharding.
    col_steps = _cdiv(N, tile_cols)
    row_steps = _cdiv(B, tile_rows)
    if row_steps * col_steps < min_steps:
        need_rows = _cdiv(min_steps, col_steps)
        cand = _round_up(_cdiv(B, need_rows), sub)
        if sub <= cand < B:
            tile_rows = cand                # split rows (keeps lane-dense cols)
        elif tile_cols % 128 == 0 and tile_cols >= 256:
            need_cols = _cdiv(min_steps, _cdiv(B, tile_rows))
            cand_c = max(128, _round_up(_cdiv(tile_cols, need_cols), 128))
            if cand_c < tile_cols:
                tile_cols = cand_c          # split columns (still 128-dense)
    return tile_rows, tile_cols


def andor(x1: jax.Array, x2: jax.Array):
    assert x1.shape == x2.shape and x1.dtype == x2.dtype
    orig_shape = x1.shape
    dtype = x1.dtype
    dtype_bytes = jnp.dtype(dtype).itemsize
    total = int(x1.size)
    total_bytes = total * dtype_bytes

    def _plain(a, b):
        prod = a * b
        return prod, a + b - prod

    # Tiny tensors: plain XLA elementwise fusion beats any kernel overhead.
    if total == 0 or total_bytes < _MIN_PALLAS_BYTES:
        return _plain(x1, x2)

    # Lane-dense 2-D relayout (elementwise op => layout-agnostic).
    B, N = _lane_dense_view(orig_shape, total)
    x1_2d = x1.reshape(B, N)
    x2_2d = x2.reshape(B, N)

    # Per-generation sizing: bigger blocks / VMEM on 128 MiB chips (v5e/v6e),
    # conservative on v7x (64 MiB per TensorCore).
    vmem_cap = _vmem_capacity_bytes()
    big_vmem = vmem_cap >= (96 << 20)
    target_bytes = (4 << 20) if big_vmem else (2 << 20)
    vmem_ceiling = (96 << 20) if big_vmem else (48 << 20)

    sub = _sublane_multiple(dtype)
    min_steps = 4 if total_bytes >= (8 << 20) else 2
    tile_rows, tile_cols = _choose_tiles(
        B, N, dtype_bytes, sub, target_bytes, min_steps)

    # VMEM budget: 2 inputs + 2 outputs, each double-buffered -> ~8x block
    # bytes, plus headroom.
    block_bytes = tile_rows * tile_cols * dtype_bytes
    needed = 10 * block_bytes + (4 << 20)
    if needed > vmem_ceiling:
        # Untileable pathological layout (huge non-128 trailing dim): let XLA
        # handle it rather than risk VMEM OOM.
        return _plain(x1, x2)
    vmem_limit = min(max(16 << 20, needed), vmem_ceiling)

    grid = (_cdiv(B, tile_rows), _cdiv(N, tile_cols))
    spec = pl.BlockSpec((tile_rows, tile_cols), lambda i, j: (i, j))

    out_shape = (
        jax.ShapeDtypeStruct((B, N), dtype),
        jax.ShapeDtypeStruct((B, N), dtype),
    )

    and_out, or_out = pl.pallas_call(
        _andor_kernel,
        out_shape=out_shape,
        grid_spec=pl.GridSpec(
            grid=grid,
            in_specs=[spec, spec],
            out_specs=[spec, spec],
        ),
        compiler_params=pltpu.CompilerParams(
            dimension_semantics=("parallel", "parallel"),
            vmem_limit_bytes=vmem_limit,
        ),
    )(x1_2d, x2_2d)

    return and_out.reshape(orig_shape), or_out.reshape(orig_shape)


def andor_ref(x1, x2):
    prod = x1 * x2
    return prod, x1 + x2 - prod


def _check(name, shape, dtype, k1, k2):
    x1 = jax.random.uniform(k1, shape, dtype=jnp.float32).astype(dtype)
    x2 = jax.random.uniform(k2, shape, dtype=jnp.float32).astype(dtype)
    and_out, or_out = andor(x1, x2)
    jax.block_until_ready((and_out, or_out))
    and_exp, or_exp = andor_ref(x1, x2)
    atol = 1e-6 if jnp.dtype(dtype).itemsize >= 4 else 2e-2
    assert and_out.shape == x1.shape and or_out.shape == x1.shape
    assert and_out.dtype == dtype and or_out.dtype == dtype
    assert jnp.allclose(and_out.astype(jnp.float32),
                        and_exp.astype(jnp.float32), atol=atol), name
    assert jnp.allclose(or_out.astype(jnp.float32),
                        or_exp.astype(jnp.float32), atol=atol), name


if __name__ == "__main__":
    key = jax.random.PRNGKey(0)
    keys = jax.random.split(key, 10)

    # 1) Module-like small input: (batch=2, channels=4, 16x16) -> XLA fallback.
    _check("small_4d", (2, 4, 16, 16), jnp.float32, keys[0], keys[1])

    # 2) Medium f32, already lane-dense -> Pallas path, >=2 grid steps.
    _check("medium_2d", (512, 1024), jnp.float32, keys[2], keys[3])

    # 3) Odd trailing dim -> lane-dense relayout to (rows, 512) before tiling.
    _check("odd_last_dim", (512, 513, 3), jnp.float32, keys[4], keys[5])

    # 4) bf16 -> 16-row sublane packing path.
    _check("bf16", (1024, 768), jnp.bfloat16, keys[6], keys[7])

    # 5) Flat 1-D input -> relayout to (rows, 1024), no 1-row degenerate tiles.
    _check("flat_1d", (1 << 19,), jnp.float32, keys[8], keys[9])

    print("KERNEL_OK")
</pallas_src>

<mosaic_0001>
module attributes {stable_mosaic.version = 11 : i64} {
  func.func @_andor_kernel(%arg0: i32, %arg1: i32, %arg2: memref<256x1024xf32, #tpu.memory_space<vmem>>, %arg3: memref<256x1024xf32, #tpu.memory_space<vmem>>, %arg4: memref<256x1024xf32, #tpu.memory_space<vmem>>, %arg5: memref<256x1024xf32, #tpu.memory_space<vmem>>) attributes {dimension_semantics = [#tpu.dimension_semantics<parallel>, #tpu.dimension_semantics<parallel>], iteration_bounds = array<i64: 2, 1>, scalar_prefetch = 0 : i64, scratch_operands = 0 : i64, tpu.core_type = #tpu.core_type<tc>, window_params = [{transform_indices = @transform_0, window_bounds = array<i64: 256, 1024>}, {transform_indices = @transform_1, window_bounds = array<i64: 256, 1024>}, {transform_indices = @transform_2, window_bounds = array<i64: 256, 1024>}, {transform_indices = @transform_3, window_bounds = array<i64: 256, 1024>}]} {
    %c0 = arith.constant 0 : index
    %c0_0 = arith.constant 0 : index
    %0 = vector.load %arg2[%c0, %c0_0] : memref<256x1024xf32, #tpu.memory_space<vmem>>, vector<256x1024xf32>
    %c0_1 = arith.constant 0 : index
    %c0_2 = arith.constant 0 : index
    %1 = vector.load %arg3[%c0_1, %c0_2] : memref<256x1024xf32, #tpu.memory_space<vmem>>, vector<256x1024xf32>
    %2 = arith.mulf %0, %1 : vector<256x1024xf32>
    %c0_3 = arith.constant 0 : index
    %c0_4 = arith.constant 0 : index
    %3 = vector.load %arg4[%c0_3, %c0_4] : memref<256x1024xf32, #tpu.memory_space<vmem>>, vector<256x1024xf32>
    tpu.vector_store %arg4[%c0_3, %c0_4], %2 {strides = array<i32>} : memref<256x1024xf32, #tpu.memory_space<vmem>>, vector<256x1024xf32>,
    %4 = arith.addf %0, %1 : vector<256x1024xf32>
    %5 = arith.subf %4, %2 : vector<256x1024xf32>
    %c0_5 = arith.constant 0 : index
    %c0_6 = arith.constant 0 : index
    %6 = vector.load %arg5[%c0_5, %c0_6] : memref<256x1024xf32, #tpu.memory_space<vmem>>, vector<256x1024xf32>
    tpu.vector_store %arg5[%c0_5, %c0_6], %5 {strides = array<i32>} : memref<256x1024xf32, #tpu.memory_space<vmem>>, vector<256x1024xf32>,
    return
  }
  func.func @transform_0(%arg0: i32, %arg1: i32) -> (i32, i32) {
    %c0_i32 = arith.constant 0 : i32
    return %arg0, %arg1 : i32, i32
  }
  func.func @transform_1(%arg0: i32, %arg1: i32) -> (i32, i32) {
    %c0_i32 = arith.constant 0 : i32
    return %arg0, %arg1 : i32, i32
  }
  func.func @transform_2(%arg0: i32, %arg1: i32) -> (i32, i32) {
    %c0_i32 = arith.constant 0 : i32
    return %arg0, %arg1 : i32, i32
  }
  func.func @transform_3(%arg0: i32, %arg1: i32) -> (i32, i32) {
    %c0_i32 = arith.constant 0 : i32
    return %arg0, %arg1 : i32, i32
  }
}

</mosaic_0001>

<llo_original>
// kernel: tpu_custom_call.1
$region0: #{tpu_custom_call.1}
  #allocation0 [shape = 'u32[]', space=smem, size = 0x4, offset = 0x4, fixed_abs, tag = 'smem constant byte address 0x4 - core index']
  #allocation1 [shape = 'u32[144,128]{1,0:T(1,128)}', space=vmem, size = 0x12000, scoped, tag = 'internal scratch']
  %s0 = inlined_call_operand.hbm [shape: f32[512,1024], index: 0, kind: input, shape index: {}]
  %s1 = inlined_call_operand.hbm [shape: f32[512,1024], index: 1, kind: input, shape index: {}]
  %s2 = inlined_call_operand.hbm [shape: f32[512,1024], index: 2, kind: output, shape index: {0}]
  %s3 = inlined_call_operand.hbm [shape: f32[512,1024], index: 3, kind: output, shape index: {1}]
  %4 = xla_tuple %s2, %s3
  %s5 = sld [smem:[#allocation0]]
  $region57: #{tpu_custom_call.1} parent=0
    _
  %s7 = ssub.s32 1, %s5
  %s8 = scalar_select 0, %s7, %s5
  $region1: #{tpu_custom_call.1} parent=0
    #allocation2 [shape = 'u8[2097152]{0}', space=vmem, size = 0x200000, scoped, tag = 'input window, operand 0']
    #allocation3 [shape = 's32[2]{0}', space=sflag, size = 0x8, scoped, tag = 'scoped memory for tpu_custom_call.1']
    #allocation4 [shape = 's32[2]{0}', space=sflag, size = 0x8, scoped, tag = 'scoped memory for tpu_custom_call.1']
    #allocation5 [shape = 'u8[2097152]{0}', space=vmem, size = 0x200000, scoped, tag = 'input window, operand 1']
    #allocation6 [shape = 's32[2]{0}', space=sflag, size = 0x8, scoped, tag = 'scoped memory for tpu_custom_call.1']
    #allocation7 [shape = 'u8[2097152]{0}', space=vmem, size = 0x200000, scoped, tag = 'output window, operand 0']
    #allocation8 [shape = 'u8[2097152]{0}', space=vmem, size = 0x200000, scoped, tag = 'output window, operand 1']
    #allocation9 [shape = 's32[2]{0}', space=sflag, size = 0x8, scoped, tag = 'scoped memory for tpu_custom_call.1']
    %9 = vsyncpa [#allocation3], 0
    %s10 = scalar_lea.sflag [#allocation3], 1
    %11 = vsyncpa %s10, 0
    %12 = vsyncpa [#allocation6], 0
    %s13 = scalar_lea.sflag [#allocation6], 1
    %14 = vsyncpa %s13, 0
    %15 = vsyncpa [#allocation4], 0
    %s16 = scalar_lea.sflag [#allocation4], 1
    %17 = vsyncpa %s16, 0
    %18 = vsyncpa [#allocation9], 0
    %s19 = scalar_lea.sflag [#allocation9], 1
    %20 = vsyncpa %s19, 0
    loop: start=0, step=1, limit=4
    $region2: #{tpu_custom_call.1} parent=1 // loop_pre_header
      _
    $region3: #{tpu_custom_call.1} parent=1 // loop_header
      %s22 = sphi 0, %s26
      %p23 = scmp.ge.s32.totalorder %s22, 4
      %s29 = sphi 0, %s41
      %s30 = sphi 0, %s37
      %s31 = sphi 0, %s29
      %s32 = sphi 0, %s30
      %s33 = sphi 0, %s31
      %s34 = sphi 0, %s32
      %s46 = sphi 0, %s48
      %s49 = sphi 0, %s46
      %s50 = sphi 0, %s49
      %s66 = sphi 0, %s50
      %s74 = sphi 0, %s76
      %s77 = sphi 0, %s74
      %s78 = sphi 0, %s77
      %s94 = sphi 0, %s78
      %s102 = sphi 0, %s104
      %s105 = sphi 0, %s102
      %s106 = sphi 0, %s105
      %s122 = sphi 0, %s106
      %s130 = sphi 0, %s132
      %s133 = sphi 0, %s130
      %s134 = sphi 0, %s133
      %s150 = sphi 0, %s134
    $region4: #{tpu_custom_call.1} parent=1 // loop_header_branch
      %25 = sbr.rel (%p23) target = $region8
    $region5: #{tpu_custom_call.1} parent=1 // loop_body
      %s27 = ssub.s32 %s22, 1
      %s28 = ssub.s32 %s22, 2
      %s35 = sadd.s32 1, %s30
      %p36 = scmp.ge.s32.totalorder %s35, 1
      %s37 = scalar_select %p36, 0, %s35
      %s38 = sadd.s32 1, %s29
      %s39 = scalar_select %p36, %s38, %s29
      %p40 = scmp.ge.s32.totalorder %s39, 2
      %s41 = scalar_select %p40, 0, %s39
      %s42 = ssub.s32 %s29, %s41
      %s43 = ssub.s32 %s30, %s37
      %s44 = sor.u32 %s42, %s43
      %p45 = scmp.eq.s32.totalorder %s44, 0
      %s47 = sadd.s32 %s46, 1
      %s48 = scalar_select %p45, %s46, %s47
      %p51 = pneg %p45
      %p52 = scmp.eq.s32.totalorder %s22, 1
      %p53 = por %p51, %p52
      %p54 = scmp.ne.s32.totalorder %s46, %s49
      %p55 = scmp.eq.s32.totalorder %s22, 0
      %p56 = por %p54, %p55
      %p57 = scmp.ne.s32.totalorder %s46, %s49
      %p58 = scmp.eq.s32.totalorder %s27, 1
      %p59 = por %p57, %p58
      %p60 = scmp.ne.s32.totalorder %s49, %s50
      %p61 = scmp.eq.s32.totalorder %s27, 0
      %p62 = por %p60, %p61
      %p63 = scmp.ne.s32.totalorder %s49, %s50
      %p64 = scmp.eq.s32.totalorder %s28, 1
      %p65 = por %p63, %p64
      %p67 = scmp.ne.s32.totalorder %s50, %s66
      %p68 = scmp.eq.s32.totalorder %s28, 0
      %p69 = por %p67, %p68
      %s70 = ssub.s32 %s29, %s41
      %s71 = ssub.s32 %s30, %s37
      %s72 = sor.u32 %s70, %s71
      %p73 = scmp.eq.s32.totalorder %s72, 0
      %s75 = sadd.s32 %s74, 1
      %s76 = scalar_select %p73, %s74, %s75
      %p79 = pneg %p73
      %p80 = scmp.eq.s32.totalorder %s22, 1
      %p81 = por %p79, %p80
      %p82 = scmp.ne.s32.totalorder %s74, %s77
      %p83 = scmp.eq.s32.totalorder %s22, 0
      %p84 = por %p82, %p83
      %p85 = scmp.ne.s32.totalorder %s74, %s77
      %p86 = scmp.eq.s32.totalorder %s27, 1
      %p87 = por %p85, %p86
      %p88 = scmp.ne.s32.totalorder %s77, %s78
      %p89 = scmp.eq.s32.totalorder %s27, 0
      %p90 = por %p88, %p89
      %p91 = scmp.ne.s32.totalorder %s77, %s78
      %p92 = scmp.eq.s32.totalorder %s28, 1
      %p93 = por %p91, %p92
      %p95 = scmp.ne.s32.totalorder %s78, %s94
      %p96 = scmp.eq.s32.totalorder %s28, 0
      %p97 = por %p95, %p96
      %s98 = ssub.s32 %s29, %s41
      %s99 = ssub.s32 %s30, %s37
      %s100 = sor.u32 %s98, %s99
      %p101 = scmp.eq.s32.totalorder %s100, 0
      %s103 = sadd.s32 %s102, 1
      %s104 = scalar_select %p101, %s102, %s103
      %p107 = pneg %p101
      %p108 = scmp.eq.s32.totalorder %s22, 1
      %p109 = por %p107, %p108
      %p110 = scmp.ne.s32.totalorder %s102, %s105
      %p111 = scmp.eq.s32.totalorder %s22, 0
      %p112 = por %p110, %p111
      %p113 = scmp.ne.s32.totalorder %s102, %s105
      %p114 = scmp.eq.s32.totalorder %s27, 1
      %p115 = por %p113, %p114
      %p116 = scmp.ne.s32.totalorder %s105, %s106
      %p117 = scmp.eq.s32.totalorder %s27, 0
      %p118 = por %p116, %p117
      %p119 = scmp.ne.s32.totalorder %s105, %s106
      %p120 = scmp.eq.s32.totalorder %s28, 1
      %p121 = por %p119, %p120
      %p123 = scmp.ne.s32.totalorder %s106, %s122
      %p124 = scmp.eq.s32.totalorder %s28, 0
      %p125 = por %p123, %p124
      %s126 = ssub.s32 %s29, %s41
      %s127 = ssub.s32 %s30, %s37
      %s128 = sor.u32 %s126, %s127
      %p129 = scmp.eq.s32.totalorder %s128, 0
      %s131 = sadd.s32 %s130, 1
      %s132 = scalar_select %p129, %s130, %s131
      %p135 = pneg %p129
      %p136 = scmp.eq.s32.totalorder %s22, 1
      %p137 = por %p135, %p136
      %p138 = scmp.ne.s32.totalorder %s130, %s133
      %p139 = scmp.eq.s32.totalorder %s22, 0
      %p140 = por %p138, %p139
      %p141 = scmp.ne.s32.totalorder %s130, %s133
      %p142 = scmp.eq.s32.totalorder %s27, 1
      %p143 = por %p141, %p142
      %p144 = scmp.ne.s32.totalorder %s133, %s134
      %p145 = scmp.eq.s32.totalorder %s27, 0
      %p146 = por %p144, %p145
      %p147 = scmp.ne.s32.totalorder %s133, %s134
      %p148 = scmp.eq.s32.totalorder %s28, 1
      %p149 = por %p147, %p148
      %p151 = scmp.ne.s32.totalorder %s134, %s150
      %p152 = scmp.eq.s32.totalorder %s28, 0
      %p153 = por %p151, %p152
      %p154 = scmp.le.s32.totalorder 1, %s22
      %p155 = scmp.lt.s32.totalorder %s22, 3
      %p156 = pnand %p154, %p155
      %p157 = pneg %p156
      // Predicated region
      $region9: #{tpu_custom_call.1} parent=5 // pred_check
        _
      $region10: #{tpu_custom_call.1} parent=5 // pred_check_branch
        %159 = sbr.rel (%p156) target = $region12
      $region11: #{tpu_custom_call.1} parent=5 // pred_region
        %s160 = ssub.s32 %s22, 1
      $region12: #{tpu_custom_call.1} parent=5 // pred_fallthru
        _
      %p161 = scmp.lt.s32.totalorder %s22, 2
      // Predicated region
      $region13: #{tpu_custom_call.1} parent=5 // pred_check
        %p162 = pneg %p161
      $region14: #{tpu_custom_call.1} parent=5 // pred_check_branch
        %164 = sbr.rel (%p162) target = $region16
      $region15: #{tpu_custom_call.1} parent=5 // pred_region
        // Predicated region
        $region17: #{tpu_custom_call.1} parent=15 // pred_check
          %p165 = pneg %p56
        $region18: #{tpu_custom_call.1} parent=15 // pred_check_branch
          %167 = sbr.rel (%p165) target = $region20
        $region19: #{tpu_custom_call.1} parent=15 // pred_region
          %s168 = sand.u32 %s46, 1
          %s169 = scalar_lea.sflag [#allocation3], %s168
          %s170 = sand.u32 %s46, 1
          %s171 = smul.addr %s170, 2048
          %s172 = scalar_lea.vmem [#allocation2], %s171
          %s173 = smul.u32 32, %s29
          %s174 = smul.u32 8, %s30
          %s176 = ssub.s32 32768, 32768
          %177 = vsyncadd %s169, %s176
          %s178 = smul.addr %s173, 8
          %s179 = sadd.s32 %s174, %s178
          %s180 = smul.addr %s179, 128
          %s181 = scalar_lea.hbm %s0, %s180
          %s182 = sshll.u32 %s172, 4
          %s183 = int_to_ptr.vmem [resolvable:$true] %s182
          %188 = dma.hbm_to_vmem [thread:$0]  %s181, 32768, %s183, %s169, 1024, 1024, 64
        $region20: #{tpu_custom_call.1} parent=15 // pred_fallthru
          _
        // Predicated region
        $region21: #{tpu_custom_call.1} parent=15 // pred_check
          %p189 = pneg %p84
        $region22: #{tpu_custom_call.1} parent=15 // pred_check_branch
          %191 = sbr.rel (%p189) target = $region24
        $region23: #{tpu_custom_call.1} parent=15 // pred_region
          %s192 = sand.u32 %s74, 1
          %s193 = scalar_lea.sflag [#allocation6], %s192
          %s194 = sand.u32 %s74, 1
          %s195 = smul.addr %s194, 2048
          %s196 = scalar_lea.vmem [#allocation5], %s195
          %s197 = smul.u32 32, %s29
          %s198 = smul.u32 8, %s30
          %s200 = ssub.s32 32768, 32768
          %201 = vsyncadd %s193, %s200
          %s202 = smul.addr %s197, 8
          %s203 = sadd.s32 %s198, %s202
          %s204 = smul.addr %s203, 128
          %s205 = scalar_lea.hbm %s1, %s204
          %s206 = sshll.u32 %s196, 4
          %s207 = int_to_ptr.vmem [resolvable:$true] %s206
          %212 = dma.hbm_to_vmem [thread:$0]  %s205, 32768, %s207, %s193, 1024, 1024, 64
        $region24: #{tpu_custom_call.1} parent=15 // pred_fallthru
          _
      $region16: #{tpu_custom_call.1} parent=5 // pred_fallthru
        _
      %p213 = scmp.le.s32.totalorder 1, %s22
      %p214 = scmp.lt.s32.totalorder %s22, 3
      %p215 = pnand %p213, %p214
      %p216 = pneg %p215
      // Predicated region
      $region25: #{tpu_custom_call.1} parent=5 // pred_check
        _
      $region26: #{tpu_custom_call.1} parent=5 // pred_check_branch
        %218 = sbr.rel (%p215) target = $region28
      $region27: #{tpu_custom_call.1} parent=5 // pred_region
        %s219 = ssub.s32 %s22, 1
        %s220 = sand.u32 %s49, 1
        %s221 = scalar_lea.sflag [#allocation3], %s220
        %s222 = sand.u32 %s49, 1
        %s223 = smul.addr %s222, 2048
        %s224 = scalar_lea.vmem [#allocation2], %s223
        // Predicated region
        $region29: #{tpu_custom_call.1} parent=27 // pred_check
          %p225 = pneg %p62
        $region30: #{tpu_custom_call.1} parent=27 // pred_check_branch
          %227 = sbr.rel (%p225) target = $region32
        $region31: #{tpu_custom_call.1} parent=27 // pred_region
          %228 = dma.done %s221, 32768
        $region32: #{tpu_custom_call.1} parent=27 // pred_fallthru
          _
        %s229 = sand.u32 %s77, 1
        %s230 = scalar_lea.sflag [#allocation6], %s229
        %s231 = sand.u32 %s77, 1
        %s232 = smul.addr %s231, 2048
        %s233 = scalar_lea.vmem [#allocation5], %s232
        // Predicated region
        $region33: #{tpu_custom_call.1} parent=27 // pred_check
          %p234 = pneg %p90
        $region34: #{tpu_custom_call.1} parent=27 // pred_check_branch
          %236 = sbr.rel (%p234) target = $region36
        $region35: #{tpu_custom_call.1} parent=27 // pred_region
          %237 = dma.done %s230, 32768
        $region36: #{tpu_custom_call.1} parent=27 // pred_fallthru
          _
        %s238 = sand.u32 %s49, 1
        %s239 = scalar_lea.sflag [#allocation3], %s238
        %s240 = sand.u32 %s49, 1
        %s241 = smul.addr %s240, 2048
        %s242 = scalar_lea.vmem [#allocation2], %s241
        %p243 = pneg %p62
        %p244 = pneg %p59
        %s245 = sand.u32 %s77, 1
        %s246 = scalar_lea.sflag [#allocation6], %s245
        %s247 = sand.u32 %s77, 1
        %s248 = smul.addr %s247, 2048
        %s249 = scalar_lea.vmem [#allocation5], %s248
        %p250 = pneg %p90
        %p251 = pneg %p87
        %p252 = pneg %p118
        %p253 = pneg %p115
        %s254 = sand.u32 %s105, 1
        %s255 = scalar_lea.sflag [#allocation4], %s254
        %s256 = sand.u32 %s105, 1
        %s257 = smul.addr %s256, 2048
        %s258 = scalar_lea.vmem [#allocation7], %s257
        %p259 = pneg %p146
        %p260 = pneg %p143
        %s261 = sand.u32 %s133, 1
        %s262 = scalar_lea.sflag [#allocation9], %s261
        %s263 = sand.u32 %s133, 1
        %s264 = smul.addr %s263, 2048
        %s265 = scalar_lea.vmem [#allocation8], %s264
        %s266 = smul.u32 32, %s31
        %s267 = smul.u32 8, %s32
        %s268 = smul.u32 32, %s31
        %s269 = smul.u32 8, %s32
        %s270 = smul.u32 32, %s31
        %s271 = smul.u32 8, %s32
        %s272 = smul.u32 32, %s31
        %s273 = smul.u32 8, %s32
        %v274 = vld [vmem:[%s224] sm:$0xff]
        %v275 = vld [vmem:[%s224 + $0x8] sm:$0xff]
        %v276 = vld [vmem:[%s224 + $0x10] sm:$0xff]
        %v277 = vld [vmem:[%s224 + $0x18] sm:$0xff]
        %v278 = vld [vmem:[%s224 + $0x20] sm:$0xff]
        %v279 = vld [vmem:[%s224 + $0x28] sm:$0xff]
        %v280 = vld [vmem:[%s224 + $0x30] sm:$0xff]
        %v281 = vld [vmem:[%s224 + $0x38] sm:$0xff]
        %v282 = vld [vmem:[%s224 + $0x40] sm:$0xff]
        %v283 = vld [vmem:[%s224 + $0x48] sm:$0xff]
        %v284 = vld [vmem:[%s224 + $0x50] sm:$0xff]
        %v285 = vld [vmem:[%s224 + $0x58] sm:$0xff]
        %v286 = vld [vmem:[%s224 + $0x60] sm:$0xff]
        %v287 = vld [vmem:[%s224 + $0x68] sm:$0xff]
        %v288 = vld [vmem:[%s224 + $0x70] sm:$0xff]
        %v289 = vld [vmem:[%s224 + $0x78] sm:$0xff]
        %v290 = vld [vmem:[%s224 + $0x80] sm:$0xff]
        %v291 = vld [vmem:[%s224 + $0x88] sm:$0xff]
        %v292 = vld [vmem:[%s224 + $0x90] sm:$0xff]
        %v293 = vld [vmem:[%s224 + $0x98] sm:$0xff]
        %v294 = vld [vmem:[%s224 + $0xa0] sm:$0xff]
        %v295 = vld [vmem:[%s224 + $0xa8] sm:$0xff]
        %v296 = vld [vmem:[%s224 + $0xb0] sm:$0xff]
        %v297 = vld [vmem:[%s224 + $0xb8] sm:$0xff]
        %v298 = vld [vmem:[%s224 + $0xc0] sm:$0xff]
        %v299 = vld [vmem:[%s224 + $0xc8] sm:$0xff]
        %v300 = vld [vmem:[%s224 + $0xd0] sm:$0xff]
        %v301 = vld [vmem:[%s224 + $0xd8] sm:$0xff]
        %v302 = vld [vmem:[%s224 + $0xe0] sm:$0xff]
        %v303 = vld [vmem:[%s224 + $0xe8] sm:$0xff]
        %v304 = vld [vmem:[%s224 + $0xf0] sm:$0xff]
        %v305 = vld [vmem:[%s224 + $0xf8] sm:$0xff]
        %v306 = vld [vmem:[%s224 + $0x100] sm:$0xff]
        %v307 = vld [vmem:[%s224 + $0x108] sm:$0xff]
        %v308 = vld [vmem:[%s224 + $0x110] sm:$0xff]
        %v309 = vld [vmem:[%s224 + $0x118] sm:$0xff]
        %v310 = vld [vmem:[%s224 + $0x120] sm:$0xff]
        %v311 = vld [vmem:[%s224 + $0x128] sm:$0xff]
        %v312 = vld [vmem:[%s224 + $0x130] sm:$0xff]
        %v313 = vld [vmem:[%s224 + $0x138] sm:$0xff]
        %v314 = vld [vmem:[%s224 + $0x140] sm:$0xff]
        %v315 = vld [vmem:[%s224 + $0x148] sm:$0xff]
        %v316 = vld [vmem:[%s224 + $0x150] sm:$0xff]
        %v317 = vld [vmem:[%s224 + $0x158] sm:$0xff]
        %v318 = vld [vmem:[%s224 + $0x160] sm:$0xff]
        %v319 = vld [vmem:[%s224 + $0x168] sm:$0xff]
        %v320 = vld [vmem:[%s224 + $0x170] sm:$0xff]
        %v321 = vld [vmem:[%s224 + $0x178] sm:$0xff]
        %v322 = vld [vmem:[%s224 + $0x180] sm:$0xff]
        %v323 = vld [vmem:[%s224 + $0x188] sm:$0xff]
        %v324 = vld [vmem:[%s224 + $0x190] sm:$0xff]
        %v325 = vld [vmem:[%s224 + $0x198] sm:$0xff]
        %v326 = vld [vmem:[%s224 + $0x1a0] sm:$0xff]
        %v327 = vld [vmem:[%s224 + $0x1a8] sm:$0xff]
        %v328 = vld [vmem:[%s224 + $0x1b0] sm:$0xff]
        %v329 = vld [vmem:[%s224 + $0x1b8] sm:$0xff]
        %v330 = vld [vmem:[%s224 + $0x1c0] sm:$0xff]
        %v331 = vld [vmem:[%s224 + $0x1c8] sm:$0xff]
        %v332 = vld [vmem:[%s224 + $0x1d0] sm:$0xff]
        %v333 = vld [vmem:[%s224 + $0x1d8] sm:$0xff]
        %v334 = vld [vmem:[%s224 + $0x1e0] sm:$0xff]
        %v335 = vld [vmem:[%s224 + $0x1e8] sm:$0xff]
        %v336 = vld [vmem:[%s224 + $0x1f0] sm:$0xff]
        %v337 = vld [vmem:[%s224 + $0x1f8] sm:$0xff]
        %v338 = vld [vmem:[%s224 + $0x200] sm:$0xff]
        %v339 = vld [vmem:[%s224 + $0x208] sm:$0xff]
        %v340 = vld [vmem:[%s224 + $0x210] sm:$0xff]
        %v341 = vld [vmem:[%s224 + $0x218] sm:$0xff]
        %v342 = vld [vmem:[%s224 + $0x220] sm:$0xff]
        %v343 = vld [vmem:[%s224 + $0x228] sm:$0xff]
        %v344 = vld [vmem:[%s224 + $0x230] sm:$0xff]
        %v345 = vld [vmem:[%s224 + $0x238] sm:$0xff]
        %v346 = vld [vmem:[%s224 + $0x240] sm:$0xff]
        %v347 = vld [vmem:[%s224 + $0x248] sm:$0xff]
        %v348 = vld [vmem:[%s224 + $0x250] sm:$0xff]
        %v349 = vld [vmem:[%s224 + $0x258] sm:$0xff]
        %v350 = vld [vmem:[%s224 + $0x260] sm:$0xff]
        %v351 = vld [vmem:[%s224 + $0x268] sm:$0xff]
        %v352 = vld [vmem:[%s224 + $0x270] sm:$0xff]
        %v353 = vld [vmem:[%s224 + $0x278] sm:$0xff]
        %v354 = vld [vmem:[%s224 + $0x280] sm:$0xff]
        %v355 = vld [vmem:[%s224 + $0x288] sm:$0xff]
        %v356 = vld [vmem:[%s224 + $0x290] sm:$0xff]
        %v357 = vld [vmem:[%s224 + $0x298] sm:$0xff]
        %v358 = vld [vmem:[%s224 + $0x2a0] sm:$0xff]
        %v359 = vld [vmem:[%s224 + $0x2a8] sm:$0xff]
        %v360 = vld [vmem:[%s224 + $0x2b0] sm:$0xff]
        %v361 = vld [vmem:[%s224 + $0x2b8] sm:$0xff]
        %v362 = vld [vmem:[%s224 + $0x2c0] sm:$0xff]
        %v363 = vld [vmem:[%s224 + $0x2c8] sm:$0xff]
        %v364 = vld [vmem:[%s224 + $0x2d0] sm:$0xff]
        %v365 = vld [vmem:[%s224 + $0x2d8] sm:$0xff]
        %v366 = vld [vmem:[%s224 + $0x2e0] sm:$0xff]
        %v367 = vld [vmem:[%s224 + $0x2e8] sm:$0xff]
        %v368 = vld [vmem:[%s224 + $0x2f0] sm:$0xff]
        %v369 = vld [vmem:[%s224 + $0x2f8] sm:$0xff]
        %v370 = vld [vmem:[%s224 + $0x300] sm:$0xff]
        %v371 = vld [vmem:[%s224 + $0x308] sm:$0xff]
        %v372 = vld [vmem:[%s224 + $0x310] sm:$0xff]
        %v373 = vld [vmem:[%s224 + $0x318] sm:$0xff]
        %v374 = vld [vmem:[%s224 + $0x320] sm:$0xff]
        %v375 = vld [vmem:[%s224 + $0x328] sm:$0xff]
        %v376 = vld [vmem:[%s224 + $0x330] sm:$0xff]
        %v377 = vld [vmem:[%s224 + $0x338] sm:$0xff]
        %v378 = vld [vmem:[%s224 + $0x340] sm:$0xff]
        %v379 = vld [vmem:[%s224 + $0x348] sm:$0xff]
        %v380 = vld [vmem:[%s224 + $0x350] sm:$0xff]
        %v381 = vld [vmem:[%s224 + $0x358] sm:$0xff]
        %v382 = vld [vmem:[%s224 + $0x360] sm:$0xff]
        %v383 = vld [vmem:[%s224 + $0x368] sm:$0xff]
        %v384 = vld [vmem:[%s224 + $0x370] sm:$0xff]
        %v385 = vld [vmem:[%s224 + $0x378] sm:$0xff]
        %v386 = vld [vmem:[%s224 + $0x380] sm:$0xff]
        %v387 = vld [vmem:[%s224 + $0x388] sm:$0xff]
        %v388 = vld [vmem:[%s224 + $0x390] sm:$0xff]
        %v389 = vld [vmem:[%s224 + $0x398] sm:$0xff]
        %v390 = vld [vmem:[%s224 + $0x3a0] sm:$0xff]
        %v391 = vld [vmem:[%s224 + $0x3a8] sm:$0xff]
        %v392 = vld [vmem:[%s224 + $0x3b0] sm:$0xff]
        %v393 = vld [vmem:[%s224 + $0x3b8] sm:$0xff]
        %v394 = vld [vmem:[%s224 + $0x3c0] sm:$0xff]
        %v395 = vld [vmem:[%s224 + $0x3c8] sm:$0xff]
        %v396 = vld [vmem:[%s224 + $0x3d0] sm:$0xff]
        %v397 = vld [vmem:[%s224 + $0x3d8] sm:$0xff]
        %v398 = vld [vmem:[%s224 + $0x3e0] sm:$0xff]
        %v399 = vld [vmem:[%s224 + $0x3e8] sm:$0xff]
        %v400 = vld [vmem:[%s224 + $0x3f0] sm:$0xff]
        %v401 = vld [vmem:[%s224 + $0x3f8] sm:$0xff]
        %v402 = vld [vmem:[%s224 + $0x400] sm:$0xff]
        %v403 = vld [vmem:[%s224 + $0x408] sm:$0xff]
        %v404 = vld [vmem:[%s224 + $0x410] sm:$0xff]
        %v405 = vld [vmem:[%s224 + $0x418] sm:$0xff]
        %v406 = vld [vmem:[%s224 + $0x420] sm:$0xff]
        %v407 = vld [vmem:[%s224 + $0x428] sm:$0xff]
        %v408 = vld [vmem:[%s224 + $0x430] sm:$0xff]
        %v409 = vld [vmem:[%s224 + $0x438] sm:$0xff]
        %v410 = vld [vmem:[%s224 + $0x440] sm:$0xff]
        %v411 = vld [vmem:[%s224 + $0x448] sm:$0xff]
        %v412 = vld [vmem:[%s224 + $0x450] sm:$0xff]
        %v413 = vld [vmem:[%s224 + $0x458] sm:$0xff]
        %v414 = vld [vmem:[%s224 + $0x460] sm:$0xff]
        %v415 = vld [vmem:[%s224 + $0x468] sm:$0xff]
        %v416 = vld [vmem:[%s224 + $0x470] sm:$0xff]
        %v417 = vld [vmem:[%s224 + $0x478] sm:$0xff]
        %v418 = vld [vmem:[%s224 + $0x480] sm:$0xff]
        %v419 = vld [vmem:[%s224 + $0x488] sm:$0xff]
        %v420 = vld [vmem:[%s224 + $0x490] sm:$0xff]
        %v421 = vld [vmem:[%s224 + $0x498] sm:$0xff]
        %v422 = vld [vmem:[%s224 + $0x4a0] sm:$0xff]
        %v423 = vld [vmem:[%s224 + $0x4a8] sm:$0xff]
        %v424 = vld [vmem:[%s224 + $0x4b0] sm:$0xff]
        %v425 = vld [vmem:[%s224 + $0x4b8] sm:$0xff]
        %v426 = vld [vmem:[%s224 + $0x4c0] sm:$0xff]
        %v427 = vld [vmem:[%s224 + $0x4c8] sm:$0xff]
        %v428 = vld [vmem:[%s224 + $0x4d0] sm:$0xff]
        %v429 = vld [vmem:[%s224 + $0x4d8] sm:$0xff]
        %v430 = vld [vmem:[%s224 + $0x4e0] sm:$0xff]
        %v431 = vld [vmem:[%s224 + $0x4e8] sm:$0xff]
        %v432 = vld [vmem:[%s224 + $0x4f0] sm:$0xff]
        %v433 = vld [vmem:[%s224 + $0x4f8] sm:$0xff]
        %v434 = vld [vmem:[%s224 + $0x500] sm:$0xff]
        %v435 = vld [vmem:[%s224 + $0x508] sm:$0xff]
        %v436 = vld [vmem:[%s224 + $0x510] sm:$0xff]
        %v437 = vld [vmem:[%s224 + $0x518] sm:$0xff]
        %v438 = vld [vmem:[%s224 + $0x520] sm:$0xff]
        %v439 = vld [vmem:[%s224 + $0x528] sm:$0xff]
        %v440 = vld [vmem:[%s224 + $0x530] sm:$0xff]
        %v441 = vld [vmem:[%s224 + $0x538] sm:$0xff]
        %v442 = vld [vmem:[%s224 + $0x540] sm:$0xff]
        %v443 = vld [vmem:[%s224 + $0x548] sm:$0xff]
        %v444 = vld [vmem:[%s224 + $0x550] sm:$0xff]
        %v445 = vld [vmem:[%s224 + $0x558] sm:$0xff]
        %v446 = vld [vmem:[%s224 + $0x560] sm:$0xff]
        %v447 = vld [vmem:[%s224 + $0x568] sm:$0xff]
        %v448 = vld [vmem:[%s224 + $0x570] sm:$0xff]
        %v449 = vld [vmem:[%s224 + $0x578] sm:$0xff]
        %v450 = vld [vmem:[%s224 + $0x580] sm:$0xff]
        %v451 = vld [vmem:[%s224 + $0x588] sm:$0xff]
        %v452 = vld [vmem:[%s224 + $0x590] sm:$0xff]
        %v453 = vld [vmem:[%s224 + $0x598] sm:$0xff]
        %v454 = vld [vmem:[%s224 + $0x5a0] sm:$0xff]
        %v455 = vld [vmem:[%s224 + $0x5a8] sm:$0xff]
        %v456 = vld [vmem:[%s224 + $0x5b0] sm:$0xff]
        %v457 = vld [vmem:[%s224 + $0x5b8] sm:$0xff]
        %v458 = vld [vmem:[%s224 + $0x5c0] sm:$0xff]
        %v459 = vld [vmem:[%s224 + $0x5c8] sm:$0xff]
        %v460 = vld [vmem:[%s224 + $0x5d0] sm:$0xff]
        %v461 = vld [vmem:[%s224 + $0x5d8] sm:$0xff]
        %v462 = vld [vmem:[%s224 + $0x5e0] sm:$0xff]
        %v463 = vld [vmem:[%s224 + $0x5e8] sm:$0xff]
        %v464 = vld [vmem:[%s224 + $0x5f0] sm:$0xff]
        %v465 = vld [vmem:[%s224 + $0x5f8] sm:$0xff]
        %v466 = vld [vmem:[%s224 + $0x600] sm:$0xff]
        %v467 = vld [vmem:[%s224 + $0x608] sm:$0xff]
        %v468 = vld [vmem:[%s224 + $0x610] sm:$0xff]
        %v469 = vld [vmem:[%s224 + $0x618] sm:$0xff]
        %v470 = vld [vmem:[%s224 + $0x620] sm:$0xff]
        %v471 = vld [vmem:[%s224 + $0x628] sm:$0xff]
        %v472 = vld [vmem:[%s224 + $0x630] sm:$0xff]
        %v473 = vld [vmem:[%s224 + $0x638] sm:$0xff]
        %v474 = vld [vmem:[%s224 + $0x640] sm:$0xff]
        %v475 = vld [vmem:[%s224 + $0x648] sm:$0xff]
        %v476 = vld [vmem:[%s224 + $0x650] sm:$0xff]
        %v477 = vld [vmem:[%s224 + $0x658] sm:$0xff]
        %v478 = vld [vmem:[%s224 + $0x660] sm:$0xff]
        %v479 = vld [vmem:[%s224 + $0x668] sm:$0xff]
        %v480 = vld [vmem:[%s224 + $0x670] sm:$0xff]
        %v481 = vld [vmem:[%s224 + $0x678] sm:$0xff]
        %v482 = vld [vmem:[%s224 + $0x680] sm:$0xff]
        %v483 = vld [vmem:[%s224 + $0x688] sm:$0xff]
        %v484 = vld [vmem:[%s224 + $0x690] sm:$0xff]
        %v485 = vld [vmem:[%s224 + $0x698] sm:$0xff]
        %v486 = vld [vmem:[%s224 + $0x6a0] sm:$0xff]
        %v487 = vld [vmem:[%s224 + $0x6a8] sm:$0xff]
        %v488 = vld [vmem:[%s224 + $0x6b0] sm:$0xff]
        %v489 = vld [vmem:[%s224 + $0x6b8] sm:$0xff]
        %v490 = vld [vmem:[%s224 + $0x6c0] sm:$0xff]
        %v491 = vld [vmem:[%s224 + $0x6c8] sm:$0xff]
        %v492 = vld [vmem:[%s224 + $0x6d0] sm:$0xff]
        %v493 = vld [vmem:[%s224 + $0x6d8] sm:$0xff]
        %v494 = vld [vmem:[%s224 + $0x6e0] sm:$0xff]
        %v495 = vld [vmem:[%s224 + $0x6e8] sm:$0xff]
        %v496 = vld [vmem:[%s224 + $0x6f0] sm:$0xff]
        %v497 = vld [vmem:[%s224 + $0x6f8] sm:$0xff]
        %v498 = vld [vmem:[%s224 + $0x700] sm:$0xff]
        %v499 = vld [vmem:[%s224 + $0x708] sm:$0xff]
        %v500 = vld [vmem:[%s224 + $0x710] sm:$0xff]
        %v501 = vld [vmem:[%s224 + $0x718] sm:$0xff]
        %v502 = vld [vmem:[%s224 + $0x720] sm:$0xff]
        %v503 = vld [vmem:[%s224 + $0x728] sm:$0xff]
        %v504 = vld [vmem:[%s224 + $0x730] sm:$0xff]
        %v505 = vld [vmem:[%s224 + $0x738] sm:$0xff]
        %v506 = vld [vmem:[%s224 + $0x740] sm:$0xff]
        %v507 = vld [vmem:[%s224 + $0x748] sm:$0xff]
        %v508 = vld [vmem:[%s224 + $0x750] sm:$0xff]
        %v509 = vld [vmem:[%s224 + $0x758] sm:$0xff]
        %v510 = vld [vmem:[%s224 + $0x760] sm:$0xff]
        %v511 = vld [vmem:[%s224 + $0x768] sm:$0xff]
        %v512 = vld [vmem:[%s224 + $0x770] sm:$0xff]
        %v513 = vld [vmem:[%s224 + $0x778] sm:$0xff]
        %v514 = vld [vmem:[%s224 + $0x780] sm:$0xff]
        %v515 = vld [vmem:[%s224 + $0x788] sm:$0xff]
        %v516 = vld [vmem:[%s224 + $0x790] sm:$0xff]
        %v517 = vld [vmem:[%s224 + $0x798] sm:$0xff]
        %v518 = vld [vmem:[%s224 + $0x7a0] sm:$0xff]
        %v519 = vld [vmem:[%s224 + $0x7a8] sm:$0xff]
        %v520 = vld [vmem:[%s224 + $0x7b0] sm:$0xff]
        %v521 = vld [vmem:[%s224 + $0x7b8] sm:$0xff]
        %v522 = vld [vmem:[%s224 + $0x7c0] sm:$0xff]
        %v523 = vld [vmem:[%s224 + $0x7c8] sm:$0xff]
        %v524 = vld [vmem:[%s224 + $0x7d0] sm:$0xff]
        %v525 = vld [vmem:[%s224 + $0x7d8] sm:$0xff]
        %v526 = vld [vmem:[%s224 + $0x7e0] sm:$0xff]
        %v527 = vld [vmem:[%s224 + $0x7e8] sm:$0xff]
        %v528 = vld [vmem:[%s224 + $0x7f0] sm:$0xff]
        %v529 = vld [vmem:[%s224 + $0x7f8] sm:$0xff]
        %v530 = vld [vmem:[%s233] sm:$0xff]
        %v531 = vld [vmem:[%s233 + $0x8] sm:$0xff]
        %v532 = vld [vmem:[%s233 + $0x10] sm:$0xff]
        %v533 = vld [vmem:[%s233 + $0x18] sm:$0xff]
        %v534 = vld [vmem:[%s233 + $0x20] sm:$0xff]
        %v535 = vld [vmem:[%s233 + $0x28] sm:$0xff]
        %v536 = vld [vmem:[%s233 + $0x30] sm:$0xff]
        %v537 = vld [vmem:[%s233 + $0x38] sm:$0xff]
        %v538 = vld [vmem:[%s233 + $0x40] sm:$0xff]
        %v539 = vld [vmem:[%s233 + $0x48] sm:$0xff]
        %v540 = vld [vmem:[%s233 + $0x50] sm:$0xff]
        %v541 = vld [vmem:[%s233 + $0x58] sm:$0xff]
        %v542 = vld [vmem:[%s233 + $0x60] sm:$0xff]
        %v543 = vld [vmem:[%s233 + $0x68] sm:$0xff]
        %v544 = vld [vmem:[%s233 + $0x70] sm:$0xff]
        %v545 = vld [vmem:[%s233 + $0x78] sm:$0xff]
        %v546 = vld [vmem:[%s233 + $0x80] sm:$0xff]
        %v547 = vld [vmem:[%s233 + $0x88] sm:$0xff]
        %v548 = vld [vmem:[%s233 + $0x90] sm:$0xff]
        %v549 = vld [vmem:[%s233 + $0x98] sm:$0xff]
        %v550 = vld [vmem:[%s233 + $0xa0] sm:$0xff]
        %v551 = vld [vmem:[%s233 + $0xa8] sm:$0xff]
        %v552 = vld [vmem:[%s233 + $0xb0] sm:$0xff]
        %v553 = vld [vmem:[%s233 + $0xb8] sm:$0xff]
        %v554 = vld [vmem:[%s233 + $0xc0] sm:$0xff]
        %v555 = vld [vmem:[%s233 + $0xc8] sm:$0xff]
        %v556 = vld [vmem:[%s233 + $0xd0] sm:$0xff]
        %v557 = vld [vmem:[%s233 + $0xd8] sm:$0xff]
        %v558 = vld [vmem:[%s233 + $0xe0] sm:$0xff]
        %v559 = vld [vmem:[%s233 + $0xe8] sm:$0xff]
        %v560 = vld [vmem:[%s233 + $0xf0] sm:$0xff]
        %v561 = vld [vmem:[%s233 + $0xf8] sm:$0xff]
        %v562 = vld [vmem:[%s233 + $0x100] sm:$0xff]
        %v563 = vld [vmem:[%s233 + $0x108] sm:$0xff]
        %v564 = vld [vmem:[%s233 + $0x110] sm:$0xff]
        %v565 = vld [vmem:[%s233 + $0x118] sm:$0xff]
        %v566 = vld [vmem:[%s233 + $0x120] sm:$0xff]
        %v567 = vld [vmem:[%s233 + $0x128] sm:$0xff]
        %v568 = vld [vmem:[%s233 + $0x130] sm:$0xff]
        %v569 = vld [vmem:[%s233 + $0x138] sm:$0xff]
        %v570 = vld [vmem:[%s233 + $0x140] sm:$0xff]
        %v571 = vld [vmem:[%s233 + $0x148] sm:$0xff]
        %v572 = vld [vmem:[%s233 + $0x150] sm:$0xff]
        %v573 = vld [vmem:[%s233 + $0x158] sm:$0xff]
        %v574 = vld [vmem:[%s233 + $0x160] sm:$0xff]
        %v575 = vld [vmem:[%s233 + $0x168] sm:$0xff]
        %v576 = vld [vmem:[%s233 + $0x170] sm:$0xff]
        %v577 = vld [vmem:[%s233 + $0x178] sm:$0xff]
        %v578 = vld [vmem:[%s233 + $0x180] sm:$0xff]
        %v579 = vld [vmem:[%s233 + $0x188] sm:$0xff]
        %v580 = vld [vmem:[%s233 + $0x190] sm:$0xff]
        %v581 = vld [vmem:[%s233 + $0x198] sm:$0xff]
        %v582 = vld [vmem:[%s233 + $0x1a0] sm:$0xff]
        %v583 = vld [vmem:[%s233 + $0x1a8] sm:$0xff]
        %v584 = vld [vmem:[%s233 + $0x1b0] sm:$0xff]
        %v585 = vld [vmem:[%s233 + $0x1b8] sm:$0xff]
        %v586 = vld [vmem:[%s233 + $0x1c0] sm:$0xff]
        %v587 = vld [vmem:[%s233 + $0x1c8] sm:$0xff]
        %v588 = vld [vmem:[%s233 + $0x1d0] sm:$0xff]
        %v589 = vld [vmem:[%s233 + $0x1d8] sm:$0xff]
        %v590 = vld [vmem:[%s233 + $0x1e0] sm:$0xff]
        %v591 = vld [vmem:[%s233 + $0x1e8] sm:$0xff]
        %v592 = vld [vmem:[%s233 + $0x1f0] sm:$0xff]
        %v593 = vld [vmem:[%s233 + $0x1f8] sm:$0xff]
        %v594 = vld [vmem:[%s233 + $0x200] sm:$0xff]
        %v595 = vld [vmem:[%s233 + $0x208] sm:$0xff]
        %v596 = vld [vmem:[%s233 + $0x210] sm:$0xff]
        %v597 = vld [vmem:[%s233 + $0x218] sm:$0xff]
        %v598 = vld [vmem:[%s233 + $0x220] sm:$0xff]
        %v599 = vld [vmem:[%s233 + $0x228] sm:$0xff]
        %v600 = vld [vmem:[%s233 + $0x230] sm:$0xff]
        %v601 = vld [vmem:[%s233 + $0x238] sm:$0xff]
        %v602 = vld [vmem:[%s233 + $0x240] sm:$0xff]
        %v603 = vld [vmem:[%s233 + $0x248] sm:$0xff]
        %v604 = vld [vmem:[%s233 + $0x250] sm:$0xff]
        %v605 = vld [vmem:[%s233 + $0x258] sm:$0xff]
        %v606 = vld [vmem:[%s233 + $0x260] sm:$0xff]
        %v607 = vld [vmem:[%s233 + $0x268] sm:$0xff]
        %v608 = vld [vmem:[%s233 + $0x270] sm:$0xff]
        %v609 = vld [vmem:[%s233 + $0x278] sm:$0xff]
        %v610 = vld [vmem:[%s233 + $0x280] sm:$0xff]
        %v611 = vld [vmem:[%s233 + $0x288] sm:$0xff]
        %v612 = vld [vmem:[%s233 + $0x290] sm:$0xff]
        %v613 = vld [vmem:[%s233 + $0x298] sm:$0xff]
        %v614 = vld [vmem:[%s233 + $0x2a0] sm:$0xff]
        %v615 = vld [vmem:[%s233 + $0x2a8] sm:$0xff]
        %v616 = vld [vmem:[%s233 + $0x2b0] sm:$0xff]
        %v617 = vld [vmem:[%s233 + $0x2b8] sm:$0xff]
        %v618 = vld [vmem:[%s233 + $0x2c0] sm:$0xff]
        %v619 = vld [vmem:[%s233 + $0x2c8] sm:$0xff]
        %v620 = vld [vmem:[%s233 + $0x2d0] sm:$0xff]
        %v621 = vld [vmem:[%s233 + $0x2d8] sm:$0xff]
        %v622 = vld [vmem:[%s233 + $0x2e0] sm:$0xff]
        %v623 = vld [vmem:[%s233 + $0x2e8] sm:$0xff]
        %v624 = vld [vmem:[%s233 + $0x2f0] sm:$0xff]
        %v625 = vld [vmem:[%s233 + $0x2f8] sm:$0xff]
        %v626 = vld [vmem:[%s233 + $0x300] sm:$0xff]
        %v627 = vld [vmem:[%s233 + $0x308] sm:$0xff]
        %v628 = vld [vmem:[%s233 + $0x310] sm:$0xff]
        %v629 = vld [vmem:[%s233 + $0x318] sm:$0xff]
        %v630 = vld [vmem:[%s233 + $0x320] sm:$0xff]
        %v631 = vld [vmem:[%s233 + $0x328] sm:$0xff]
        %v632 = vld [vmem:[%s233 + $0x330] sm:$0xff]
        %v633 = vld [vmem:[%s233 + $0x338] sm:$0xff]
        %v634 = vld [vmem:[%s233 + $0x340] sm:$0xff]
        %v635 = vld [vmem:[%s233 + $0x348] sm:$0xff]
        %v636 = vld [vmem:[%s233 + $0x350] sm:$0xff]
        %v637 = vld [vmem:[%s233 + $0x358] sm:$0xff]
        %v638 = vld [vmem:[%s233 + $0x360] sm:$0xff]
        %v639 = vld [vmem:[%s233 + $0x368] sm:$0xff]
        %v640 = vld [vmem:[%s233 + $0x370] sm:$0xff]
        %v641 = vld [vmem:[%s233 + $0x378] sm:$0xff]
        %v642 = vld [vmem:[%s233 + $0x380] sm:$0xff]
        %v643 = vld [vmem:[%s233 + $0x388] sm:$0xff]
        %v644 = vld [vmem:[%s233 + $0x390] sm:$0xff]
        %v645 = vld [vmem:[%s233 + $0x398] sm:$0xff]
        %v646 = vld [vmem:[%s233 + $0x3a0] sm:$0xff]
        %v647 = vld [vmem:[%s233 + $0x3a8] sm:$0xff]
        %v648 = vld [vmem:[%s233 + $0x3b0] sm:$0xff]
        %v649 = vld [vmem:[%s233 + $0x3b8] sm:$0xff]
        %v650 = vld [vmem:[%s233 + $0x3c0] sm:$0xff]
        %v651 = vld [vmem:[%s233 + $0x3c8] sm:$0xff]
        %v652 = vld [vmem:[%s233 + $0x3d0] sm:$0xff]
        %v653 = vld [vmem:[%s233 + $0x3d8] sm:$0xff]
        %v654 = vld [vmem:[%s233 + $0x3e0] sm:$0xff]
        %v655 = vld [vmem:[%s233 + $0x3e8] sm:$0xff]
        %v656 = vld [vmem:[%s233 + $0x3f0] sm:$0xff]
        %v657 = vld [vmem:[%s233 + $0x3f8] sm:$0xff]
        %v658 = vld [vmem:[%s233 + $0x400] sm:$0xff]
        %v659 = vld [vmem:[%s233 + $0x408] sm:$0xff]
        %v660 = vld [vmem:[%s233 + $0x410] sm:$0xff]
        %v661 = vld [vmem:[%s233 + $0x418] sm:$0xff]
        %v662 = vld [vmem:[%s233 + $0x420] sm:$0xff]
        %v663 = vld [vmem:[%s233 + $0x428] sm:$0xff]
        %v664 = vld [vmem:[%s233 + $0x430] sm:$0xff]
        %v665 = vld [vmem:[%s233 + $0x438] sm:$0xff]
        %v666 = vld [vmem:[%s233 + $0x440] sm:$0xff]
        %v667 = vld [vmem:[%s233 + $0x448] sm:$0xff]
        %v668 = vld [vmem:[%s233 + $0x450] sm:$0xff]
        %v669 = vld [vmem:[%s233 + $0x458] sm:$0xff]
        %v670 = vld [vmem:[%s233 + $0x460] sm:$0xff]
        %v671 = vld [vmem:[%s233 + $0x468] sm:$0xff]
        %v672 = vld [vmem:[%s233 + $0x470] sm:$0xff]
        %v673 = vld [vmem:[%s233 + $0x478] sm:$0xff]
        %v674 = vld [vmem:[%s233 + $0x480] sm:$0xff]
        %v675 = vld [vmem:[%s233 + $0x488] sm:$0xff]
        %v676 = vld [vmem:[%s233 + $0x490] sm:$0xff]
        %v677 = vld [vmem:[%s233 + $0x498] sm:$0xff]
        %v678 = vld [vmem:[%s233 + $0x4a0] sm:$0xff]
        %v679 = vld [vmem:[%s233 + $0x4a8] sm:$0xff]
        %v680 = vld [vmem:[%s233 + $0x4b0] sm:$0xff]
        %v681 = vld [vmem:[%s233 + $0x4b8] sm:$0xff]
        %v682 = vld [vmem:[%s233 + $0x4c0] sm:$0xff]
        %v683 = vld [vmem:[%s233 + $0x4c8] sm:$0xff]
        %v684 = vld [vmem:[%s233 + $0x4d0] sm:$0xff]
        %v685 = vld [vmem:[%s233 + $0x4d8] sm:$0xff]
        %v686 = vld [vmem:[%s233 + $0x4e0] sm:$0xff]
        %v687 = vld [vmem:[%s233 + $0x4e8] sm:$0xff]
        %v688 = vld [vmem:[%s233 + $0x4f0] sm:$0xff]
        %v689 = vld [vmem:[%s233 + $0x4f8] sm:$0xff]
        %v690 = vld [vmem:[%s233 + $0x500] sm:$0xff]
        %v691 = vld [vmem:[%s233 + $0x508] sm:$0xff]
        %v692 = vld [vmem:[%s233 + $0x510] sm:$0xff]
        %v693 = vld [vmem:[%s233 + $0x518] sm:$0xff]
        %v694 = vld [vmem:[%s233 + $0x520] sm:$0xff]
        %v695 = vld [vmem:[%s233 + $0x528] sm:$0xff]
        %v696 = vld [vmem:[%s233 + $0x530] sm:$0xff]
        %v697 = vld [vmem:[%s233 + $0x538] sm:$0xff]
        %v698 = vld [vmem:[%s233 + $0x540] sm:$0xff]
        %v699 = vld [vmem:[%s233 + $0x548] sm:$0xff]
        %v700 = vld [vmem:[%s233 + $0x550] sm:$0xff]
        %v701 = vld [vmem:[%s233 + $0x558] sm:$0xff]
        %v702 = vld [vmem:[%s233 + $0x560] sm:$0xff]
        %v703 = vld [vmem:[%s233 + $0x568] sm:$0xff]
        %v704 = vld [vmem:[%s233 + $0x570] sm:$0xff]
        %v705 = vld [vmem:[%s233 + $0x578] sm:$0xff]
        %v706 = vld [vmem:[%s233 + $0x580] sm:$0xff]
        %v707 = vld [vmem:[%s233 + $0x588] sm:$0xff]
        %v708 = vld [vmem:[%s233 + $0x590] sm:$0xff]
        %v709 = vld [vmem:[%s233 + $0x598] sm:$0xff]
        %v710 = vld [vmem:[%s233 + $0x5a0] sm:$0xff]
        %v711 = vld [vmem:[%s233 + $0x5a8] sm:$0xff]
        %v712 = vld [vmem:[%s233 + $0x5b0] sm:$0xff]
        %v713 = vld [vmem:[%s233 + $0x5b8] sm:$0xff]
        %v714 = vld [vmem:[%s233 + $0x5c0] sm:$0xff]
        %v715 = vld [vmem:[%s233 + $0x5c8] sm:$0xff]
        %v716 = vld [vmem:[%s233 + $0x5d0] sm:$0xff]
        %v717 = vld [vmem:[%s233 + $0x5d8] sm:$0xff]
        %v718 = vld [vmem:[%s233 + $0x5e0] sm:$0xff]
        %v719 = vld [vmem:[%s233 + $0x5e8] sm:$0xff]
        %v720 = vld [vmem:[%s233 + $0x5f0] sm:$0xff]
        %v721 = vld [vmem:[%s233 + $0x5f8] sm:$0xff]
        %v722 = vld [vmem:[%s233 + $0x600] sm:$0xff]
        %v723 = vld [vmem:[%s233 + $0x608] sm:$0xff]
        %v724 = vld [vmem:[%s233 + $0x610] sm:$0xff]
        %v725 = vld [vmem:[%s233 + $0x618] sm:$0xff]
        %v726 = vld [vmem:[%s233 + $0x620] sm:$0xff]
        %v727 = vld [vmem:[%s233 + $0x628] sm:$0xff]
        %v728 = vld [vmem:[%s233 + $0x630] sm:$0xff]
        %v729 = vld [vmem:[%s233 + $0x638] sm:$0xff]
        %v730 = vld [vmem:[%s233 + $0x640] sm:$0xff]
        %v731 = vld [vmem:[%s233 + $0x648] sm:$0xff]
        %v732 = vld [vmem:[%s233 + $0x650] sm:$0xff]
        %v733 = vld [vmem:[%s233 + $0x658] sm:$0xff]
        %v734 = vld [vmem:[%s233 + $0x660] sm:$0xff]
        %v735 = vld [vmem:[%s233 + $0x668] sm:$0xff]
        %v736 = vld [vmem:[%s233 + $0x670] sm:$0xff]
        %v737 = vld [vmem:[%s233 + $0x678] sm:$0xff]
        %v738 = vld [vmem:[%s233 + $0x680] sm:$0xff]
        %v739 = vld [vmem:[%s233 + $0x688] sm:$0xff]
        %v740 = vld [vmem:[%s233 + $0x690] sm:$0xff]
        %v741 = vld [vmem:[%s233 + $0x698] sm:$0xff]
        %v742 = vld [vmem:[%s233 + $0x6a0] sm:$0xff]
        %v743 = vld [vmem:[%s233 + $0x6a8] sm:$0xff]
        %v744 = vld [vmem:[%s233 + $0x6b0] sm:$0xff]
        %v745 = vld [vmem:[%s233 + $0x6b8] sm:$0xff]
        %v746 = vld [vmem:[%s233 + $0x6c0] sm:$0xff]
        %v747 = vld [vmem:[%s233 + $0x6c8] sm:$0xff]
        %v748 = vld [vmem:[%s233 + $0x6d0] sm:$0xff]
        %v749 = vld [vmem:[%s233 + $0x6d8] sm:$0xff]
        %v750 = vld [vmem:[%s233 + $0x6e0] sm:$0xff]
        %v751 = vld [vmem:[%s233 + $0x6e8] sm:$0xff]
        %v752 = vld [vmem:[%s233 + $0x6f0] sm:$0xff]
        %v753 = vld [vmem:[%s233 + $0x6f8] sm:$0xff]
        %v754 = vld [vmem:[%s233 + $0x700] sm:$0xff]
        %v755 = vld [vmem:[%s233 + $0x708] sm:$0xff]
        %v756 = vld [vmem:[%s233 + $0x710] sm:$0xff]
        %v757 = vld [vmem:[%s233 + $0x718] sm:$0xff]
        %v758 = vld [vmem:[%s233 + $0x720] sm:$0xff]
        %v759 = vld [vmem:[%s233 + $0x728] sm:$0xff]
        %v760 = vld [vmem:[%s233 + $0x730] sm:$0xff]
        %v761 = vld [vmem:[%s233 + $0x738] sm:$0xff]
        %v762 = vld [vmem:[%s233 + $0x740] sm:$0xff]
        %v763 = vld [vmem:[%s233 + $0x748] sm:$0xff]
        %v764 = vld [vmem:[%s233 + $0x750] sm:$0xff]
        %v765 = vld [vmem:[%s233 + $0x758] sm:$0xff]
        %v766 = vld [vmem:[%s233 + $0x760] sm:$0xff]
        %v767 = vld [vmem:[%s233 + $0x768] sm:$0xff]
        %v768 = vld [vmem:[%s233 + $0x770] sm:$0xff]
        %v769 = vld [vmem:[%s233 + $0x778] sm:$0xff]
        %v770 = vld [vmem:[%s233 + $0x780] sm:$0xff]
        %v771 = vld [vmem:[%s233 + $0x788] sm:$0xff]
        %v772 = vld [vmem:[%s233 + $0x790] sm:$0xff]
        %v773 = vld [vmem:[%s233 + $0x798] sm:$0xff]
        %v774 = vld [vmem:[%s233 + $0x7a0] sm:$0xff]
        %v775 = vld [vmem:[%s233 + $0x7a8] sm:$0xff]
        %v776 = vld [vmem:[%s233 + $0x7b0] sm:$0xff]
        %v777 = vld [vmem:[%s233 + $0x7b8] sm:$0xff]
        %v778 = vld [vmem:[%s233 + $0x7c0] sm:$0xff]
        %v779 = vld [vmem:[%s233 + $0x7c8] sm:$0xff]
        %v780 = vld [vmem:[%s233 + $0x7d0] sm:$0xff]
        %v781 = vld [vmem:[%s233 + $0x7d8] sm:$0xff]
        %v782 = vld [vmem:[%s233 + $0x7e0] sm:$0xff]
        %v783 = vld [vmem:[%s233 + $0x7e8] sm:$0xff]
        %v784 = vld [vmem:[%s233 + $0x7f0] sm:$0xff]
        %v785 = vld [vmem:[%s233 + $0x7f8] sm:$0xff]
        %v786 = vmul.f32 %v274, %v530
        %v787 = vmul.f32 %v275, %v531
        %v788 = vmul.f32 %v276, %v532
        %v789 = vmul.f32 %v277, %v533
        %v790 = vmul.f32 %v278, %v534
        %v791 = vmul.f32 %v279, %v535
        %v792 = vmul.f32 %v280, %v536
        %v793 = vmul.f32 %v281, %v537
        %v794 = vmul.f32 %v282, %v538
        %v795 = vmul.f32 %v283, %v539
        %v796 = vmul.f32 %v284, %v540
        %v797 = vmul.f32 %v285, %v541
        %v798 = vmul.f32 %v286, %v542
        %v799 = vmul.f32 %v287, %v543
        %v800 = vmul.f32 %v288, %v544
        %v801 = vmul.f32 %v289, %v545
        %v802 = vmul.f32 %v290, %v546
        %v803 = vmul.f32 %v291, %v547
        %v804 = vmul.f32 %v292, %v548
        %v805 = vmul.f32 %v293, %v549
        %v806 = vmul.f32 %v294, %v550
        %v807 = vmul.f32 %v295, %v551
        %v808 = vmul.f32 %v296, %v552
        %v809 = vmul.f32 %v297, %v553
        %v810 = vmul.f32 %v298, %v554
        %v811 = vmul.f32 %v299, %v555
        %v812 = vmul.f32 %v300, %v556
        %v813 = vmul.f32 %v301, %v557
        %v814 = vmul.f32 %v302, %v558
        %v815 = vmul.f32 %v303, %v559
        %v816 = vmul.f32 %v304, %v560
        %v817 = vmul.f32 %v305, %v561
        %v818 = vmul.f32 %v306, %v562
        %v819 = vmul.f32 %v307, %v563
        %v820 = vmul.f32 %v308, %v564
        %v821 = vmul.f32 %v309, %v565
        %v822 = vmul.f32 %v310, %v566
        %v823 = vmul.f32 %v311, %v567
        %v824 = vmul.f32 %v312, %v568
        %v825 = vmul.f32 %v313, %v569
        %v826 = vmul.f32 %v314, %v570
        %v827 = vmul.f32 %v315, %v571
        %v828 = vmul.f32 %v316, %v572
        %v829 = vmul.f32 %v317, %v573
        %v830 = vmul.f32 %v318, %v574
        %v831 = vmul.f32 %v319, %v575
        %v832 = vmul.f32 %v320, %v576
        %v833 = vmul.f32 %v321, %v577
        %v834 = vmul.f32 %v322, %v578
        %v835 = vmul.f32 %v323, %v579
        %v836 = vmul.f32 %v324, %v580
        %v837 = vmul.f32 %v325, %v581
        %v838 = vmul.f32 %v326, %v582
        %v839 = vmul.f32 %v327, %v583
        %v840 = vmul.f32 %v328, %v584
        %v841 = vmul.f32 %v329, %v585
        %v842 = vmul.f32 %v330, %v586
        %v843 = vmul.f32 %v331, %v587
        %v844 = vmul.f32 %v332, %v588
        %v845 = vmul.f32 %v333, %v589
        %v846 = vmul.f32 %v334, %v590
        %v847 = vmul.f32 %v335, %v591
        %v848 = vmul.f32 %v336, %v592
        %v849 = vmul.f32 %v337, %v593
        %v850 = vmul.f32 %v338, %v594
        %v851 = vmul.f32 %v339, %v595
        %v852 = vmul.f32 %v340, %v596
        %v853 = vmul.f32 %v341, %v597
        %v854 = vmul.f32 %v342, %v598
        %v855 = vmul.f32 %v343, %v599
        %v856 = vmul.f32 %v344, %v600
        %v857 = vmul.f32 %v345, %v601
        %v858 = vmul.f32 %v346, %v602
        %v859 = vmul.f32 %v347, %v603
        %v860 = vmul.f32 %v348, %v604
        %v861 = vmul.f32 %v349, %v605
        %v862 = vmul.f32 %v350, %v606
        %v863 = vmul.f32 %v351, %v607
        %v864 = vmul.f32 %v352, %v608
        %v865 = vmul.f32 %v353, %v609
        %v866 = vmul.f32 %v354, %v610
        %v867 = vmul.f32 %v355, %v611
        %v868 = vmul.f32 %v356, %v612
        %v869 = vmul.f32 %v357, %v613
        %v870 = vmul.f32 %v358, %v614
        %v871 = vmul.f32 %v359, %v615
        %v872 = vmul.f32 %v360, %v616
        %v873 = vmul.f32 %v361, %v617
        %v874 = vmul.f32 %v362, %v618
        %v875 = vmul.f32 %v363, %v619
        %v876 = vmul.f32 %v364, %v620
        %v877 = vmul.f32 %v365, %v621
        %v878 = vmul.f32 %v366, %v622
        %v879 = vmul.f32 %v367, %v623
        %v880 = vmul.f32 %v368, %v624
        %v881 = vmul.f32 %v369, %v625
        %v882 = vmul.f32 %v370, %v626
        %v883 = vmul.f32 %v371, %v627
        %v884 = vmul.f32 %v372, %v628
        %v885 = vmul.f32 %v373, %v629
        %v886 = vmul.f32 %v374, %v630
        %v887 = vmul.f32 %v375, %v631
        %v888 = vmul.f32 %v376, %v632
        %v889 = vmul.f32 %v377, %v633
        %v890 = vmul.f32 %v378, %v634
        %v891 = vmul.f32 %v379, %v635
        %v892 = vmul.f32 %v380, %v636
        %v893 = vmul.f32 %v381, %v637
        %v894 = vmul.f32 %v382, %v638
        %v895 = vmul.f32 %v383, %v639
        %v896 = vmul.f32 %v384, %v640
        %v897 = vmul.f32 %v385, %v641
        %v898 = vmul.f32 %v386, %v642
        %v899 = vmul.f32 %v387, %v643
        %v900 = vmul.f32 %v388, %v644
        %v901 = vmul.f32 %v389, %v645
        %v902 = vmul.f32 %v390, %v646
        %v903 = vmul.f32 %v391, %v647
        %v904 = vmul.f32 %v392, %v648
        %v905 = vmul.f32 %v393, %v649
        %v906 = vmul.f32 %v394, %v650
        %v907 = vmul.f32 %v395, %v651
        %v908 = vmul.f32 %v396, %v652
        %v909 = vmul.f32 %v397, %v653
        %v910 = vmul.f32 %v398, %v654
        %v911 = vmul.f32 %v399, %v655
        %v912 = vmul.f32 %v400, %v656
        %v913 = vmul.f32 %v401, %v657
        %v914 = vmul.f32 %v402, %v658
        %v915 = vmul.f32 %v403, %v659
        %v916 = vmul.f32 %v404, %v660
        %v917 = vmul.f32 %v405, %v661
        %v918 = vmul.f32 %v406, %v662
        %v919 = vmul.f32 %v407, %v663
        %v920 = vmul.f32 %v408, %v664
        %v921 = vmul.f32 %v409, %v665
        %v922 = vmul.f32 %v410, %v666
        %v923 = vmul.f32 %v411, %v667
        %v924 = vmul.f32 %v412, %v668
        %v925 = vmul.f32 %v413, %v669
        %v926 = vmul.f32 %v414, %v670
        %v927 = vmul.f32 %v415, %v671
        %v928 = vmul.f32 %v416, %v672
        %v929 = vmul.f32 %v417, %v673
        %v930 = vmul.f32 %v418, %v674
        %v931 = vmul.f32 %v419, %v675
        %v932 = vmul.f32 %v420, %v676
        %v933 = vmul.f32 %v421, %v677
        %v934 = vmul.f32 %v422, %v678
        %v935 = vmul.f32 %v423, %v679
        %v936 = vmul.f32 %v424, %v680
        %v937 = vmul.f32 %v425, %v681
        %v938 = vmul.f32 %v426, %v682
        %v939 = vmul.f32 %v427, %v683
        %v940 = vmul.f32 %v428, %v684
        %v941 = vmul.f32 %v429, %v685
        %v942 = vmul.f32 %v430, %v686
        %v943 = vmul.f32 %v431, %v687
        %v944 = vmul.f32 %v432, %v688
        %v945 = vmul.f32 %v433, %v689
        %v946 = vmul.f32 %v434, %v690
        %v947 = vmul.f32 %v435, %v691
        %v948 = vmul.f32 %v436, %v692
        %v949 = vmul.f32 %v437, %v693
        %v950 = vmul.f32 %v438, %v694
        %v951 = vmul.f32 %v439, %v695
        %v952 = vmul.f32 %v440, %v696
        %v953 = vmul.f32 %v441, %v697
        %v954 = vmul.f32 %v442, %v698
        %v955 = vmul.f32 %v443, %v699
        %v956 = vmul.f32 %v444, %v700
        %v957 = vmul.f32 %v445, %v701
        %v958 = vmul.f32 %v446, %v702
        %v959 = vmul.f32 %v447, %v703
        %v960 = vmul.f32 %v448, %v704
        %v961 = vmul.f32 %v449, %v705
        %v962 = vmul.f32 %v450, %v706
        %v963 = vmul.f32 %v451, %v707
        %v964 = vmul.f32 %v452, %v708
        %v965 = vmul.f32 %v453, %v709
        %v966 = vmul.f32 %v454, %v710
        %v967 = vmul.f32 %v455, %v711
        %v968 = vmul.f32 %v456, %v712
        %v969 = vmul.f32 %v457, %v713
        %v970 = vmul.f32 %v458, %v714
        %v971 = vmul.f32 %v459, %v715
        %v972 = vmul.f32 %v460, %v716
        %v973 = vmul.f32 %v461, %v717
        %v974 = vmul.f32 %v462, %v718
        %v975 = vmul.f32 %v463, %v719
        %v976 = vmul.f32 %v464, %v720
        %v977 = vmul.f32 %v465, %v721
        %v978 = vmul.f32 %v466, %v722
        %v979 = vmul.f32 %v467, %v723
        %v980 = vmul.f32 %v468, %v724
        %v981 = vmul.f32 %v469, %v725
        %v982 = vmul.f32 %v470, %v726
        %v983 = vmul.f32 %v471, %v727
        %v984 = vmul.f32 %v472, %v728
        %v985 = vmul.f32 %v473, %v729
        %v986 = vmul.f32 %v474, %v730
        %v987 = vmul.f32 %v475, %v731
        %v988 = vmul.f32 %v476, %v732
        %v989 = vmul.f32 %v477, %v733
        %v990 = vmul.f32 %v478, %v734
        %v991 = vmul.f32 %v479, %v735
        %v992 = vmul.f32 %v480, %v736
        %v993 = vmul.f32 %v481, %v737
        %v994 = vmul.f32 %v482, %v738
        %v995 = vmul.f32 %v483, %v739
        %v996 = vmul.f32 %v484, %v740
        %v997 = vmul.f32 %v485, %v741
        %v998 = vmul.f32 %v486, %v742
        %v999 = vmul.f32 %v487, %v743
        %v1000 = vmul.f32 %v488, %v744
        %v1001 = vmul.f32 %v489, %v745
        %v1002 = vmul.f32 %v490, %v746
        %v1003 = vmul.f32 %v491, %v747
        %v1004 = vmul.f32 %v492, %v748
        %v1005 = vmul.f32 %v493, %v749
        %v1006 = vmul.f32 %v494, %v750
        %v1007 = vmul.f32 %v495, %v751
        %v1008 = vmul.f32 %v496, %v752
        %v1009 = vmul.f32 %v497, %v753
        %v1010 = vmul.f32 %v498, %v754
        %v1011 = vmul.f32 %v499, %v755
        %v1012 = vmul.f32 %v500, %v756
        %v1013 = vmul.f32 %v501, %v757
        %v1014 = vmul.f32 %v502, %v758
        %v1015 = vmul.f32 %v503, %v759
        %v1016 = vmul.f32 %v504, %v760
        %v1017 = vmul.f32 %v505, %v761
        %v1018 = vmul.f32 %v506, %v762
        %v1019 = vmul.f32 %v507, %v763
        %v1020 = vmul.f32 %v508, %v764
        %v1021 = vmul.f32 %v509, %v765
        %v1022 = vmul.f32 %v510, %v766
        %v1023 = vmul.f32 %v511, %v767
        %v1024 = vmul.f32 %v512, %v768
        %v1025 = vmul.f32 %v513, %v769
        %v1026 = vmul.f32 %v514, %v770
        %v1027 = vmul.f32 %v515, %v771
        %v1028 = vmul.f32 %v516, %v772
        %v1029 = vmul.f32 %v517, %v773
        %v1030 = vmul.f32 %v518, %v774
        %v1031 = vmul.f32 %v519, %v775
        %v1032 = vmul.f32 %v520, %v776
        %v1033 = vmul.f32 %v521, %v777
        %v1034 = vmul.f32 %v522, %v778
        %v1035 = vmul.f32 %v523, %v779
        %v1036 = vmul.f32 %v524, %v780
        %v1037 = vmul.f32 %v525, %v781
        %v1038 = vmul.f32 %v526, %v782
        %v1039 = vmul.f32 %v527, %v783
        %v1040 = vmul.f32 %v528, %v784
        %v1041 = vmul.f32 %v529, %v785
        %1042 = vst [vmem:[%s258] sm:$0xff] %v786
        %1043 = vst [vmem:[%s258 + $0x8] sm:$0xff] %v787
        %1044 = vst [vmem:[%s258 + $0x10] sm:$0xff] %v788
        %1045 = vst [vmem:[%s258 + $0x18] sm:$0xff] %v789
        %1046 = vst [vmem:[%s258 + $0x20] sm:$0xff] %v790
        %1047 = vst [vmem:[%s258 + $0x28] sm:$0xff] %v791
        %1048 = vst [vmem:[%s258 + $0x30] sm:$0xff] %v792
        %1049 = vst [vmem:[%s258 + $0x38] sm:$0xff] %v793
        %1050 = vst [vmem:[%s258 + $0x40] sm:$0xff] %v794
        %1051 = vst [vmem:[%s258 + $0x48] sm:$0xff] %v795
        %1052 = vst [vmem:[%s258 + $0x50] sm:$0xff] %v796
        %1053 = vst [vmem:[%s258 + $0x58] sm:$0xff] %v797
        %1054 = vst [vmem:[%s258 + $0x60] sm:$0xff] %v798
        %1055 = vst [vmem:[%s258 + $0x68] sm:$0xff] %v799
        %1056 = vst [vmem:[%s258 + $0x70] sm:$0xff] %v800
        %1057 = vst [vmem:[%s258 + $0x78] sm:$0xff] %v801
        %1058 = vst [vmem:[%s258 + $0x80] sm:$0xff] %v802
        %1059 = vst [vmem:[%s258 + $0x88] sm:$0xff] %v803
        %1060 = vst [vmem:[%s258 + $0x90] sm:$0xff] %v804
        %1061 = vst [vmem:[%s258 + $0x98] sm:$0xff] %v805
        %1062 = vst [vmem:[%s258 + $0xa0] sm:$0xff] %v806
        %1063 = vst [vmem:[%s258 + $0xa8] sm:$0xff] %v807
        %1064 = vst [vmem:[%s258 + $0xb0] sm:$0xff] %v808
        %1065 = vst [vmem:[%s258 + $0xb8] sm:$0xff] %v809
        %1066 = vst [vmem:[%s258 + $0xc0] sm:$0xff] %v810
        %1067 = vst [vmem:[%s258 + $0xc8] sm:$0xff] %v811
        %1068 = vst [vmem:[%s258 + $0xd0] sm:$0xff] %v812
        %1069 = vst [vmem:[%s258 + $0xd8] sm:$0xff] %v813
        %1070 = vst [vmem:[%s258 + $0xe0] sm:$0xff] %v814
        %1071 = vst [vmem:[%s258 + $0xe8] sm:$0xff] %v815
        %1072 = vst [vmem:[%s258 + $0xf0] sm:$0xff] %v816
        %1073 = vst [vmem:[%s258 + $0xf8] sm:$0xff] %v817
        %1074 = vst [vmem:[%s258 + $0x100] sm:$0xff] %v818
        %1075 = vst [vmem:[%s258 + $0x108] sm:$0xff] %v819
        %1076 = vst [vmem:[%s258 + $0x110] sm:$0xff] %v820
        %1077 = vst [vmem:[%s258 + $0x118] sm:$0xff] %v821
        %1078 = vst [vmem:[%s258 + $0x120] sm:$0xff] %v822
        %1079 = vst [vmem:[%s258 + $0x128] sm:$0xff] %v823
        %1080 = vst [vmem:[%s258 + $0x130] sm:$0xff] %v824
        %1081 = vst [vmem:[%s258 + $0x138] sm:$0xff] %v825
        %1082 = vst [vmem:[%s258 + $0x140] sm:$0xff] %v826
        %1083 = vst [vmem:[%s258 + $0x148] sm:$0xff] %v827
        %1084 = vst [vmem:[%s258 + $0x150] sm:$0xff] %v828
        %1085 = vst [vmem:[%s258 + $0x158] sm:$0xff] %v829
        %1086 = vst [vmem:[%s258 + $0x160] sm:$0xff] %v830
        %1087 = vst [vmem:[%s258 + $0x168] sm:$0xff] %v831
        %1088 = vst [vmem:[%s258 + $0x170] sm:$0xff] %v832
        %1089 = vst [vmem:[%s258 + $0x178] sm:$0xff] %v833
        %1090 = vst [vmem:[%s258 + $0x180] sm:$0xff] %v834
        %1091 = vst [vmem:[%s258 + $0x188] sm:$0xff] %v835
        %1092 = vst [vmem:[%s258 + $0x190] sm:$0xff] %v836
        %1093 = vst [vmem:[%s258 + $0x198] sm:$0xff] %v837
        %1094 = vst [vmem:[%s258 + $0x1a0] sm:$0xff] %v838
        %1095 = vst [vmem:[%s258 + $0x1a8] sm:$0xff] %v839
        %1096 = vst [vmem:[%s258 + $0x1b0] sm:$0xff] %v840
        %1097 = vst [vmem:[%s258 + $0x1b8] sm:$0xff] %v841
        %1098 = vst [vmem:[%s258 + $0x1c0] sm:$0xff] %v842
        %1099 = vst [vmem:[%s258 + $0x1c8] sm:$0xff] %v843
        %1100 = vst [vmem:[%s258 + $0x1d0] sm:$0xff] %v844
        %1101 = vst [vmem:[%s258 + $0x1d8] sm:$0xff] %v845
        %1102 = vst [vmem:[%s258 + $0x1e0] sm:$0xff] %v846
        %1103 = vst [vmem:[%s258 + $0x1e8] sm:$0xff] %v847
        %1104 = vst [vmem:[%s258 + $0x1f0] sm:$0xff] %v848
        %1105 = vst [vmem:[%s258 + $0x1f8] sm:$0xff] %v849
        %1106 = vst [vmem:[%s258 + $0x200] sm:$0xff] %v850
        %1107 = vst [vmem:[%s258 + $0x208] sm:$0xff] %v851
        %1108 = vst [vmem:[%s258 + $0x210] sm:$0xff] %v852
        %1109 = vst [vmem:[%s258 + $0x218] sm:$0xff] %v853
        %1110 = vst [vmem:[%s258 + $0x220] sm:$0xff] %v854
        %1111 = vst [vmem:[%s258 + $0x228] sm:$0xff] %v855
        %1112 = vst [vmem:[%s258 + $0x230] sm:$0xff] %v856
        %1113 = vst [vmem:[%s258 + $0x238] sm:$0xff] %v857
        %1114 = vst [vmem:[%s258 + $0x240] sm:$0xff] %v858
        %1115 = vst [vmem:[%s258 + $0x248] sm:$0xff] %v859
        %1116 = vst [vmem:[%s258 + $0x250] sm:$0xff] %v860
        %1117 = vst [vmem:[%s258 + $0x258] sm:$0xff] %v861
        %1118 = vst [vmem:[%s258 + $0x260] sm:$0xff] %v862
        %1119 = vst [vmem:[%s258 + $0x268] sm:$0xff] %v863
        %1120 = vst [vmem:[%s258 + $0x270] sm:$0xff] %v864
        %1121 = vst [vmem:[%s258 + $0x278] sm:$0xff] %v865
        %1122 = vst [vmem:[%s258 + $0x280] sm:$0xff] %v866
        %1123 = vst [vmem:[%s258 + $0x288] sm:$0xff] %v867
        %1124 = vst [vmem:[%s258 + $0x290] sm:$0xff] %v868
        %1125 = vst [vmem:[%s258 + $0x298] sm:$0xff] %v869
        %1126 = vst [vmem:[%s258 + $0x2a0] sm:$0xff] %v870
        %1127 = vst [vmem:[%s258 + $0x2a8] sm:$0xff] %v871
        %1128 = vst [vmem:[%s258 + $0x2b0] sm:$0xff] %v872
        %1129 = vst [vmem:[%s258 + $0x2b8] sm:$0xff] %v873
        %1130 = vst [vmem:[%s258 + $0x2c0] sm:$0xff] %v874
        %1131 = vst [vmem:[%s258 + $0x2c8] sm:$0xff] %v875
        %1132 = vst [vmem:[%s258 + $0x2d0] sm:$0xff] %v876
        %1133 = vst [vmem:[%s258 + $0x2d8] sm:$0xff] %v877
        %1134 = vst [vmem:[%s258 + $0x2e0] sm:$0xff] %v878
        %1135 = vst [vmem:[%s258 + $0x2e8] sm:$0xff] %v879
        %1136 = vst [vmem:[%s258 + $0x2f0] sm:$0xff] %v880
        %1137 = vst [vmem:[%s258 + $0x2f8] sm:$0xff] %v881
        %1138 = vst [vmem:[%s258 + $0x300] sm:$0xff] %v882
        %1139 = vst [vmem:[%s258 + $0x308] sm:$0xff] %v883
        %1140 = vst [vmem:[%s258 + $0x310] sm:$0xff] %v884
        %1141 = vst [vmem:[%s258 + $0x318] sm:$0xff] %v885
        %1142 = vst [vmem:[%s258 + $0x320] sm:$0xff] %v886
        %1143 = vst [vmem:[%s258 + $0x328] sm:$0xff] %v887
        %1144 = vst [vmem:[%s258 + $0x330] sm:$0xff] %v888
        %1145 = vst [vmem:[%s258 + $0x338] sm:$0xff] %v889
        %1146 = vst [vmem:[%s258 + $0x340] sm:$0xff] %v890
        %1147 = vst [vmem:[%s258 + $0x348] sm:$0xff] %v891
        %1148 = vst [vmem:[%s258 + $0x350] sm:$0xff] %v892
        %1149 = vst [vmem:[%s258 + $0x358] sm:$0xff] %v893
        %1150 = vst [vmem:[%s258 + $0x360] sm:$0xff] %v894
        %1151 = vst [vmem:[%s258 + $0x368] sm:$0xff] %v895
        %1152 = vst [vmem:[%s258 + $0x370] sm:$0xff] %v896
        %1153 = vst [vmem:[%s258 + $0x378] sm:$0xff] %v897
        %1154 = vst [vmem:[%s258 + $0x380] sm:$0xff] %v898
        %1155 = vst [vmem:[%s258 + $0x388] sm:$0xff] %v899
        %1156 = vst [vmem:[%s258 + $0x390] sm:$0xff] %v900
        %1157 = vst [vmem:[%s258 + $0x398] sm:$0xff] %v901
        %1158 = vst [vmem:[%s258 + $0x3a0] sm:$0xff] %v902
        %1159 = vst [vmem:[%s258 + $0x3a8] sm:$0xff] %v903
        %1160 = vst [vmem:[%s258 + $0x3b0] sm:$0xff] %v904
        %1161 = vst [vmem:[%s258 + $0x3b8] sm:$0xff] %v905
        %1162 = vst [vmem:[%s258 + $0x3c0] sm:$0xff] %v906
        %1163 = vst [vmem:[%s258 + $0x3c8] sm:$0xff] %v907
        %1164 = vst [vmem:[%s258 + $0x3d0] sm:$0xff] %v908
        %1165 = vst [vmem:[%s258 + $0x3d8] sm:$0xff] %v909
        %1166 = vst [vmem:[%s258 + $0x3e0] sm:$0xff] %v910
        %1167 = vst [vmem:[%s258 + $0x3e8] sm:$0xff] %v911
        %1168 = vst [vmem:[%s258 + $0x3f0] sm:$0xff] %v912
        %1169 = vst [vmem:[%s258 + $0x3f8] sm:$0xff] %v913
        %1170 = vst [vmem:[%s258 + $0x400] sm:$0xff] %v914
        %1171 = vst [vmem:[%s258 + $0x408] sm:$0xff] %v915
        %1172 = vst [vmem:[%s258 + $0x410] sm:$0xff] %v916
        %1173 = vst [vmem:[%s258 + $0x418] sm:$0xff] %v917
        %1174 = vst [vmem:[%s258 + $0x420] sm:$0xff] %v918
        %1175 = vst [vmem:[%s258 + $0x428] sm:$0xff] %v919
        %1176 = vst [vmem:[%s258 + $0x430] sm:$0xff] %v920
        %1177 = vst [vmem:[%s258 + $0x438] sm:$0xff] %v921
        %1178 = vst [vmem:[%s258 + $0x440] sm:$0xff] %v922
        %1179 = vst [vmem:[%s258 + $0x448] sm:$0xff] %v923
        %1180 = vst [vmem:[%s258 + $0x450] sm:$0xff] %v924
        %1181 = vst [vmem:[%s258 + $0x458] sm:$0xff] %v925
        %1182 = vst [vmem:[%s258 + $0x460] sm:$0xff] %v926
        %1183 = vst [vmem:[%s258 + $0x468] sm:$0xff] %v927
        %1184 = vst [vmem:[%s258 + $0x470] sm:$0xff] %v928
        %1185 = vst [vmem:[%s258 + $0x478] sm:$0xff] %v929
        %1186 = vst [vmem:[%s258 + $0x480] sm:$0xff] %v930
        %1187 = vst [vmem:[%s258 + $0x488] sm:$0xff] %v931
        %1188 = vst [vmem:[%s258 + $0x490] sm:$0xff] %v932
        %1189 = vst [vmem:[%s258 + $0x498] sm:$0xff] %v933
        %1190 = vst [vmem:[%s258 + $0x4a0] sm:$0xff] %v934
        %1191 = vst [vmem:[%s258 + $0x4a8] sm:$0xff] %v935
        %1192 = vst [vmem:[%s258 + $0x4b0] sm:$0xff] %v936
        %1193 = vst [vmem:[%s258 + $0x4b8] sm:$0xff] %v937
        %1194 = vst [vmem:[%s258 + $0x4c0] sm:$0xff] %v938
        %1195 = vst [vmem:[%s258 + $0x4c8] sm:$0xff] %v939
        %1196 = vst [vmem:[%s258 + $0x4d0] sm:$0xff] %v940
        %1197 = vst [vmem:[%s258 + $0x4d8] sm:$0xff] %v941
        %1198 = vst [vmem:[%s258 + $0x4e0] sm:$0xff] %v942
        %1199 = vst [vmem:[%s258 + $0x4e8] sm:$0xff] %v943
        %1200 = vst [vmem:[%s258 + $0x4f0] sm:$0xff] %v944
        %1201 = vst [vmem:[%s258 + $0x4f8] sm:$0xff] %v945
        %1202 = vst [vmem:[%s258 + $0x500] sm:$0xff] %v946
        %1203 = vst [vmem:[%s258 + $0x508] sm:$0xff] %v947
        %1204 = vst [vmem:[%s258 + $0x510] sm:$0xff] %v948
        %1205 = vst [vmem:[%s258 + $0x518] sm:$0xff] %v949
        %1206 = vst [vmem:[%s258 + $0x520] sm:$0xff] %v950
        %1207 = vst [vmem:[%s258 + $0x528] sm:$0xff] %v951
        %1208 = vst [vmem:[%s258 + $0x530] sm:$0xff] %v952
        %1209 = vst [vmem:[%s258 + $0x538] sm:$0xff] %v953
        %1210 = vst [vmem:[%s258 + $0x540] sm:$0xff] %v954
        %1211 = vst [vmem:[%s258 + $0x548] sm:$0xff] %v955
        %1212 = vst [vmem:[%s258 + $0x550] sm:$0xff] %v956
        %1213 = vst [vmem:[%s258 + $0x558] sm:$0xff] %v957
        %1214 = vst [vmem:[%s258 + $0x560] sm:$0xff] %v958
        %1215 = vst [vmem:[%s258 + $0x568] sm:$0xff] %v959
        %1216 = vst [vmem:[%s258 + $0x570] sm:$0xff] %v960
        %1217 = vst [vmem:[%s258 + $0x578] sm:$0xff] %v961
        %1218 = vst [vmem:[%s258 + $0x580] sm:$0xff] %v962
        %1219 = vst [vmem:[%s258 + $0x588] sm:$0xff] %v963
        %1220 = vst [vmem:[%s258 + $0x590] sm:$0xff] %v964
        %1221 = vst [vmem:[%s258 + $0x598] sm:$0xff] %v965
        %1222 = vst [vmem:[%s258 + $0x5a0] sm:$0xff] %v966
        %1223 = vst [vmem:[%s258 + $0x5a8] sm:$0xff] %v967
        %1224 = vst [vmem:[%s258 + $0x5b0] sm:$0xff] %v968
        %1225 = vst [vmem:[%s258 + $0x5b8] sm:$0xff] %v969
        %1226 = vst [vmem:[%s258 + $0x5c0] sm:$0xff] %v970
        %1227 = vst [vmem:[%s258 + $0x5c8] sm:$0xff] %v971
        %1228 = vst [vmem:[%s258 + $0x5d0] sm:$0xff] %v972
        %1229 = vst [vmem:[%s258 + $0x5d8] sm:$0xff] %v973
        %1230 = vst [vmem:[%s258 + $0x5e0] sm:$0xff] %v974
        %1231 = vst [vmem:[%s258 + $0x5e8] sm:$0xff] %v975
        %1232 = vst [vmem:[%s258 + $0x5f0] sm:$0xff] %v976
        %1233 = vst [vmem:[%s258 + $0x5f8] sm:$0xff] %v977
        %1234 = vst [vmem:[%s258 + $0x600] sm:$0xff] %v978
        %1235 = vst [vmem:[%s258 + $0x608] sm:$0xff] %v979
        %1236 = vst [vmem:[%s258 + $0x610] sm:$0xff] %v980
        %1237 = vst [vmem:[%s258 + $0x618] sm:$0xff] %v981
        %1238 = vst [vmem:[%s258 + $0x620] sm:$0xff] %v982
        %1239 = vst [vmem:[%s258 + $0x628] sm:$0xff] %v983
        %1240 = vst [vmem:[%s258 + $0x630] sm:$0xff] %v984
        %1241 = vst [vmem:[%s258 + $0x638] sm:$0xff] %v985
        %1242 = vst [vmem:[%s258 + $0x640] sm:$0xff] %v986
        %1243 = vst [vmem:[%s258 + $0x648] sm:$0xff] %v987
        %1244 = vst [vmem:[%s258 + $0x650] sm:$0xff] %v988
        %1245 = vst [vmem:[%s258 + $0x658] sm:$0xff] %v989
        %1246 = vst [vmem:[%s258 + $0x660] sm:$0xff] %v990
        %1247 = vst [vmem:[%s258 + $0x668] sm:$0xff] %v991
        %1248 = vst [vmem:[%s258 + $0x670] sm:$0xff] %v992
        %1249 = vst [vmem:[%s258 + $0x678] sm:$0xff] %v993
        %1250 = vst [vmem:[%s258 + $0x680] sm:$0xff] %v994
        %1251 = vst [vmem:[%s258 + $0x688] sm:$0xff] %v995
        %1252 = vst [vmem:[%s258 + $0x690] sm:$0xff] %v996
        %1253 = vst [vmem:[%s258 + $0x698] sm:$0xff] %v997
        %1254 = vst [vmem:[%s258 + $0x6a0] sm:$0xff] %v998
        %1255 = vst [vmem:[%s258 + $0x6a8] sm:$0xff] %v999
        %1256 = vst [vmem:[%s258 + $0x6b0] sm:$0xff] %v1000
        %1257 = vst [vmem:[%s258 + $0x6b8] sm:$0xff] %v1001
        %1258 = vst [vmem:[%s258 + $0x6c0] sm:$0xff] %v1002
        %1259 = vst [vmem:[%s258 + $0x6c8] sm:$0xff] %v1003
        %1260 = vst [vmem:[%s258 + $0x6d0] sm:$0xff] %v1004
        %1261 = vst [vmem:[%s258 + $0x6d8] sm:$0xff] %v1005
        %1262 = vst [vmem:[%s258 + $0x6e0] sm:$0xff] %v1006
        %1263 = vst [vmem:[%s258 + $0x6e8] sm:$0xff] %v1007
        %1264 = vst [vmem:[%s258 + $0x6f0] sm:$0xff] %v1008
        %1265 = vst [vmem:[%s258 + $0x6f8] sm:$0xff] %v1009
        %1266 = vst [vmem:[%s258 + $0x700] sm:$0xff] %v1010
        %1267 = vst [vmem:[%s258 + $0x708] sm:$0xff] %v1011
        %1268 = vst [vmem:[%s258 + $0x710] sm:$0xff] %v1012
        %1269 = vst [vmem:[%s258 + $0x718] sm:$0xff] %v1013
        %1270 = vst [vmem:[%s258 + $0x720] sm:$0xff] %v1014
        %1271 = vst [vmem:[%s258 + $0x728] sm:$0xff] %v1015
        %1272 = vst [vmem:[%s258 + $0x730] sm:$0xff] %v1016
        %1273 = vst [vmem:[%s258 + $0x738] sm:$0xff] %v1017
        %1274 = vst [vmem:[%s258 + $0x740] sm:$0xff] %v1018
        %1275 = vst [vmem:[%s258 + $0x748] sm:$0xff] %v1019
        %1276 = vst [vmem:[%s258 + $0x750] sm:$0xff] %v1020
        %1277 = vst [vmem:[%s258 + $0x758] sm:$0xff] %v1021
        %1278 = vst [vmem:[%s258 + $0x760] sm:$0xff] %v1022
        %1279 = vst [vmem:[%s258 + $0x768] sm:$0xff] %v1023
        %1280 = vst [vmem:[%s258 + $0x770] sm:$0xff] %v1024
        %1281 = vst [vmem:[%s258 + $0x778] sm:$0xff] %v1025
        %1282 = vst [vmem:[%s258 + $0x780] sm:$0xff] %v1026
        %1283 = vst [vmem:[%s258 + $0x788] sm:$0xff] %v1027
        %1284 = vst [vmem:[%s258 + $0x790] sm:$0xff] %v1028
        %1285 = vst [vmem:[%s258 + $0x798] sm:$0xff] %v1029
        %1286 = vst [vmem:[%s258 + $0x7a0] sm:$0xff] %v1030
        %1287 = vst [vmem:[%s258 + $0x7a8] sm:$0xff] %v1031
        %1288 = vst [vmem:[%s258 + $0x7b0] sm:$0xff] %v1032
        %1289 = vst [vmem:[%s258 + $0x7b8] sm:$0xff] %v1033
        %1290 = vst [vmem:[%s258 + $0x7c0] sm:$0xff] %v1034
        %1291 = vst [vmem:[%s258 + $0x7c8] sm:$0xff] %v1035
        %1292 = vst [vmem:[%s258 + $0x7d0] sm:$0xff] %v1036
        %1293 = vst [vmem:[%s258 + $0x7d8] sm:$0xff] %v1037
        %1294 = vst [vmem:[%s258 + $0x7e0] sm:$0xff] %v1038
        %1295 = vst [vmem:[%s258 + $0x7e8] sm:$0xff] %v1039
        %1296 = vst [vmem:[%s258 + $0x7f0] sm:$0xff] %v1040
        %1297 = vst [vmem:[%s258 + $0x7f8] sm:$0xff] %v1041
        %v1298 = vadd.f32 %v274, %v530
        %v1299 = vadd.f32 %v275, %v531
        %v1300 = vadd.f32 %v276, %v532
        %v1301 = vadd.f32 %v277, %v533
        %v1302 = vadd.f32 %v278, %v534
        %v1303 = vadd.f32 %v279, %v535
        %v1304 = vadd.f32 %v280, %v536
        %v1305 = vadd.f32 %v281, %v537
        %v1306 = vadd.f32 %v282, %v538
        %v1307 = vadd.f32 %v283, %v539
        %v1308 = vadd.f32 %v284, %v540
        %v1309 = vadd.f32 %v285, %v541
        %v1310 = vadd.f32 %v286, %v542
        %v1311 = vadd.f32 %v287, %v543
        %v1312 = vadd.f32 %v288, %v544
        %v1313 = vadd.f32 %v289, %v545
        %v1314 = vadd.f32 %v290, %v546
        %v1315 = vadd.f32 %v291, %v547
        %v1316 = vadd.f32 %v292, %v548
        %v1317 = vadd.f32 %v293, %v549
        %v1318 = vadd.f32 %v294, %v550
        %v1319 = vadd.f32 %v295, %v551
        %v1320 = vadd.f32 %v296, %v552
        %v1321 = vadd.f32 %v297, %v553
        %v1322 = vadd.f32 %v298, %v554
        %v1323 = vadd.f32 %v299, %v555
        %v1324 = vadd.f32 %v300, %v556
        %v1325 = vadd.f32 %v301, %v557
        %v1326 = vadd.f32 %v302, %v558
        %v1327 = vadd.f32 %v303, %v559
        %v1328 = vadd.f32 %v304, %v560
        %v1329 = vadd.f32 %v305, %v561
        %v1330 = vadd.f32 %v306, %v562
        %v1331 = vadd.f32 %v307, %v563
        %v1332 = vadd.f32 %v308, %v564
        %v1333 = vadd.f32 %v309, %v565
        %v1334 = vadd.f32 %v310, %v566
        %v1335 = vadd.f32 %v311, %v567
        %v1336 = vadd.f32 %v312, %v568
        %v1337 = vadd.f32 %v313, %v569
        %v1338 = vadd.f32 %v314, %v570
        %v1339 = vadd.f32 %v315, %v571
        %v1340 = vadd.f32 %v316, %v572
        %v1341 = vadd.f32 %v317, %v573
        %v1342 = vadd.f32 %v318, %v574
        %v1343 = vadd.f32 %v319, %v575
        %v1344 = vadd.f32 %v320, %v576
        %v1345 = vadd.f32 %v321, %v577
        %v1346 = vadd.f32 %v322, %v578
        %v1347 = vadd.f32 %v323, %v579
        %v1348 = vadd.f32 %v324, %v580
        %v1349 = vadd.f32 %v325, %v581
        %v1350 = vadd.f32 %v326, %v582
        %v1351 = vadd.f32 %v327, %v583
        %v1352 = vadd.f32 %v328, %v584
        %v1353 = vadd.f32 %v329, %v585
        %v1354 = vadd.f32 %v330, %v586
        %v1355 = vadd.f32 %v331, %v587
        %v1356 = vadd.f32 %v332, %v588
        %v1357 = vadd.f32 %v333, %v589
        %v1358 = vadd.f32 %v334, %v590
        %v1359 = vadd.f32 %v335, %v591
        %v1360 = vadd.f32 %v336, %v592
        %v1361 = vadd.f32 %v337, %v593
        %v1362 = vadd.f32 %v338, %v594
        %v1363 = vadd.f32 %v339, %v595
        %v1364 = vadd.f32 %v340, %v596
        %v1365 = vadd.f32 %v341, %v597
        %v1366 = vadd.f32 %v342, %v598
        %v1367 = vadd.f32 %v343, %v599
        %v1368 = vadd.f32 %v344, %v600
        %v1369 = vadd.f32 %v345, %v601
        %v1370 = vadd.f32 %v346, %v602
        %v1371 = vadd.f32 %v347, %v603
        %v1372 = vadd.f32 %v348, %v604
        %v1373 = vadd.f32 %v349, %v605
        %v1374 = vadd.f32 %v350, %v606
        %v1375 = vadd.f32 %v351, %v607
        %v1376 = vadd.f32 %v352, %v608
        %v1377 = vadd.f32 %v353, %v609
        %v1378 = vadd.f32 %v354, %v610
        %v1379 = vadd.f32 %v355, %v611
        %v1380 = vadd.f32 %v356, %v612
        %v1381 = vadd.f32 %v357, %v613
        %v1382 = vadd.f32 %v358, %v614
        %v1383 = vadd.f32 %v359, %v615
        %v1384 = vadd.f32 %v360, %v616
        %v1385 = vadd.f32 %v361, %v617
        %v1386 = vadd.f32 %v362, %v618
        %v1387 = vadd.f32 %v363, %v619
        %v1388 = vadd.f32 %v364, %v620
        %v1389 = vadd.f32 %v365, %v621
        %v1390 = vadd.f32 %v366, %v622
        %v1391 = vadd.f32 %v367, %v623
        %v1392 = vadd.f32 %v368, %v624
        %v1393 = vadd.f32 %v369, %v625
        %v1394 = vadd.f32 %v370, %v626
        %v1395 = vadd.f32 %v371, %v627
        %v1396 = vadd.f32 %v372, %v628
        %v1397 = vadd.f32 %v373, %v629
        %v1398 = vadd.f32 %v374, %v630
        %v1399 = vadd.f32 %v375, %v631
        %v1400 = vadd.f32 %v376, %v632
        %v1401 = vadd.f32 %v377, %v633
        %v1402 = vadd.f32 %v378, %v634
        %v1403 = vadd.f32 %v379, %v635
        %v1404 = vadd.f32 %v380, %v636
        %v1405 = vadd.f32 %v381, %v637
        %v1406 = vadd.f32 %v382, %v638
        %v1407 = vadd.f32 %v383, %v639
        %v1408 = vadd.f32 %v384, %v640
        %v1409 = vadd.f32 %v385, %v641
        %v1410 = vadd.f32 %v386, %v642
        %v1411 = vadd.f32 %v387, %v643
        %v1412 = vadd.f32 %v388, %v644
        %v1413 = vadd.f32 %v389, %v645
        %v1414 = vadd.f32 %v390, %v646
        %v1415 = vadd.f32 %v391, %v647
        %v1416 = vadd.f32 %v392, %v648
        %v1417 = vadd.f32 %v393, %v649
        %v1418 = vadd.f32 %v394, %v650
        %v1419 = vadd.f32 %v395, %v651
        %v1420 = vadd.f32 %v396, %v652
        %v1421 = vadd.f32 %v397, %v653
        %v1422 = vadd.f32 %v398, %v654
        %v1423 = vadd.f32 %v399, %v655
        %v1424 = vadd.f32 %v400, %v656
        %v1425 = vadd.f32 %v401, %v657
        %v1426 = vadd.f32 %v402, %v658
        %v1427 = vadd.f32 %v403, %v659
        %v1428 = vadd.f32 %v404, %v660
        %v1429 = vadd.f32 %v405, %v661
        %v1430 = vadd.f32 %v406, %v662
        %v1431 = vadd.f32 %v407, %v663
        %v1432 = vadd.f32 %v408, %v664
        %v1433 = vadd.f32 %v409, %v665
        %v1434 = vadd.f32 %v410, %v666
        %v1435 = vadd.f32 %v411, %v667
        %v1436 = vadd.f32 %v412, %v668
        %v1437 = vadd.f32 %v413, %v669
        %v1438 = vadd.f32 %v414, %v670
        %v1439 = vadd.f32 %v415, %v671
        %v1440 = vadd.f32 %v416, %v672
        %v1441 = vadd.f32 %v417, %v673
        %v1442 = vadd.f32 %v418, %v674
        %v1443 = vadd.f32 %v419, %v675
        %v1444 = vadd.f32 %v420, %v676
        %v1445 = vadd.f32 %v421, %v677
        %v1446 = vadd.f32 %v422, %v678
        %v1447 = vadd.f32 %v423, %v679
        %v1448 = vadd.f32 %v424, %v680
        %v1449 = vadd.f32 %v425, %v681
        %v1450 = vadd.f32 %v426, %v682
        %v1451 = vadd.f32 %v427, %v683
        %v1452 = vadd.f32 %v428, %v684
        %v1453 = vadd.f32 %v429, %v685
        %v1454 = vadd.f32 %v430, %v686
        %v1455 = vadd.f32 %v431, %v687
        %v1456 = vadd.f32 %v432, %v688
        %v1457 = vadd.f32 %v433, %v689
        %v1458 = vadd.f32 %v434, %v690
        %v1459 = vadd.f32 %v435, %v691
        %v1460 = vadd.f32 %v436, %v692
        %v1461 = vadd.f32 %v437, %v693
        %v1462 = vadd.f32 %v438, %v694
        %v1463 = vadd.f32 %v439, %v695
        %v1464 = vadd.f32 %v440, %v696
        %v1465 = vadd.f32 %v441, %v697
        %v1466 = vadd.f32 %v442, %v698
        %v1467 = vadd.f32 %v443, %v699
        %v1468 = vadd.f32 %v444, %v700
        %v1469 = vadd.f32 %v445, %v701
        %v1470 = vadd.f32 %v446, %v702
        %v1471 = vadd.f32 %v447, %v703
        %v1472 = vadd.f32 %v448, %v704
        %v1473 = vadd.f32 %v449, %v705
        %v1474 = vadd.f32 %v450, %v706
        %v1475 = vadd.f32 %v451, %v707
        %v1476 = vadd.f32 %v452, %v708
        %v1477 = vadd.f32 %v453, %v709
        %v1478 = vadd.f32 %v454, %v710
        %v1479 = vadd.f32 %v455, %v711
        %v1480 = vadd.f32 %v456, %v712
        %v1481 = vadd.f32 %v457, %v713
        %v1482 = vadd.f32 %v458, %v714
        %v1483 = vadd.f32 %v459, %v715
        %v1484 = vadd.f32 %v460, %v716
        %v1485 = vadd.f32 %v461, %v717
        %v1486 = vadd.f32 %v462, %v718
        %v1487 = vadd.f32 %v463, %v719
        %v1488 = vadd.f32 %v464, %v720
        %v1489 = vadd.f32 %v465, %v721
        %v1490 = vadd.f32 %v466, %v722
        %v1491 = vadd.f32 %v467, %v723
        %v1492 = vadd.f32 %v468, %v724
        %v1493 = vadd.f32 %v469, %v725
        %v1494 = vadd.f32 %v470, %v726
        %v1495 = vadd.f32 %v471, %v727
        %v1496 = vadd.f32 %v472, %v728
        %v1497 = vadd.f32 %v473, %v729
        %v1498 = vadd.f32 %v474, %v730
        %v1499 = vadd.f32 %v475, %v731
        %v1500 = vadd.f32 %v476, %v732
        %v1501 = vadd.f32 %v477, %v733
        %v1502 = vadd.f32 %v478, %v734
        %v1503 = vadd.f32 %v479, %v735
        %v1504 = vadd.f32 %v480, %v736
        %v1505 = vadd.f32 %v481, %v737
        %v1506 = vadd.f32 %v482, %v738
        %v1507 = vadd.f32 %v483, %v739
        %v1508 = vadd.f32 %v484, %v740
        %v1509 = vadd.f32 %v485, %v741
        %v1510 = vadd.f32 %v486, %v742
        %v1511 = vadd.f32 %v487, %v743
        %v1512 = vadd.f32 %v488, %v744
        %v1513 = vadd.f32 %v489, %v745
        %v1514 = vadd.f32 %v490, %v746
        %v1515 = vadd.f32 %v491, %v747
        %v1516 = vadd.f32 %v492, %v748
        %v1517 = vadd.f32 %v493, %v749
        %v1518 = vadd.f32 %v494, %v750
        %v1519 = vadd.f32 %v495, %v751
        %v1520 = vadd.f32 %v496, %v752
        %v1521 = vadd.f32 %v497, %v753
        %v1522 = vadd.f32 %v498, %v754
        %v1523 = vadd.f32 %v499, %v755
        %v1524 = vadd.f32 %v500, %v756
        %v1525 = vadd.f32 %v501, %v757
        %v1526 = vadd.f32 %v502, %v758
        %v1527 = vadd.f32 %v503, %v759
        %v1528 = vadd.f32 %v504, %v760
        %v1529 = vadd.f32 %v505, %v761
        %v1530 = vadd.f32 %v506, %v762
        %v1531 = vadd.f32 %v507, %v763
        %v1532 = vadd.f32 %v508, %v764
        %v1533 = vadd.f32 %v509, %v765
        %v1534 = vadd.f32 %v510, %v766
        %v1535 = vadd.f32 %v511, %v767
        %v1536 = vadd.f32 %v512, %v768
        %v1537 = vadd.f32 %v513, %v769
        %v1538 = vadd.f32 %v514, %v770
        %v1539 = vadd.f32 %v515, %v771
        %v1540 = vadd.f32 %v516, %v772
        %v1541 = vadd.f32 %v517, %v773
        %v1542 = vadd.f32 %v518, %v774
        %v1543 = vadd.f32 %v519, %v775
        %v1544 = vadd.f32 %v520, %v776
        %v1545 = vadd.f32 %v521, %v777
        %v1546 = vadd.f32 %v522, %v778
        %v1547 = vadd.f32 %v523, %v779
        %v1548 = vadd.f32 %v524, %v780
        %v1549 = vadd.f32 %v525, %v781
        %v1550 = vadd.f32 %v526, %v782
        %v1551 = vadd.f32 %v527, %v783
        %v1552 = vadd.f32 %v528, %v784
        %v1553 = vadd.f32 %v529, %v785
        %v1554 = vsub.f32 %v1298, %v786
        %v1555 = vsub.f32 %v1299, %v787
        %v1556 = vsub.f32 %v1300, %v788
        %v1557 = vsub.f32 %v1301, %v789
        %v1558 = vsub.f32 %v1302, %v790
        %v1559 = vsub.f32 %v1303, %v791
        %v1560 = vsub.f32 %v1304, %v792
        %v1561 = vsub.f32 %v1305, %v793
        %v1562 = vsub.f32 %v1306, %v794
        %v1563 = vsub.f32 %v1307, %v795
        %v1564 = vsub.f32 %v1308, %v796
        %v1565 = vsub.f32 %v1309, %v797
        %v1566 = vsub.f32 %v1310, %v798
        %v1567 = vsub.f32 %v1311, %v799
        %v1568 = vsub.f32 %v1312, %v800
        %v1569 = vsub.f32 %v1313, %v801
        %v1570 = vsub.f32 %v1314, %v802
        %v1571 = vsub.f32 %v1315, %v803
        %v1572 = vsub.f32 %v1316, %v804
        %v1573 = vsub.f32 %v1317, %v805
        %v1574 = vsub.f32 %v1318, %v806
        %v1575 = vsub.f32 %v1319, %v807
        %v1576 = vsub.f32 %v1320, %v808
        %v1577 = vsub.f32 %v1321, %v809
        %v1578 = vsub.f32 %v1322, %v810
        %v1579 = vsub.f32 %v1323, %v811
        %v1580 = vsub.f32 %v1324, %v812
        %v1581 = vsub.f32 %v1325, %v813
        %v1582 = vsub.f32 %v1326, %v814
        %v1583 = vsub.f32 %v1327, %v815
        %v1584 = vsub.f32 %v1328, %v816
        %v1585 = vsub.f32 %v1329, %v817
        %v1586 = vsub.f32 %v1330, %v818
        %v1587 = vsub.f32 %v1331, %v819
        %v1588 = vsub.f32 %v1332, %v820
        %v1589 = vsub.f32 %v1333, %v821
        %v1590 = vsub.f32 %v1334, %v822
        %v1591 = vsub.f32 %v1335, %v823
        %v1592 = vsub.f32 %v1336, %v824
        %v1593 = vsub.f32 %v1337, %v825
        %v1594 = vsub.f32 %v1338, %v826
        %v1595 = vsub.f32 %v1339, %v827
        %v1596 = vsub.f32 %v1340, %v828
        %v1597 = vsub.f32 %v1341, %v829
        %v1598 = vsub.f32 %v1342, %v830
        %v1599 = vsub.f32 %v1343, %v831
        %v1600 = vsub.f32 %v1344, %v832
        %v1601 = vsub.f32 %v1345, %v833
        %v1602 = vsub.f32 %v1346, %v834
        %v1603 = vsub.f32 %v1347, %v835
        %v1604 = vsub.f32 %v1348, %v836
        %v1605 = vsub.f32 %v1349, %v837
        %v1606 = vsub.f32 %v1350, %v838
        %v1607 = vsub.f32 %v1351, %v839
        %v1608 = vsub.f32 %v1352, %v840
        %v1609 = vsub.f32 %v1353, %v841
        %v1610 = vsub.f32 %v1354, %v842
        %v1611 = vsub.f32 %v1355, %v843
        %v1612 = vsub.f32 %v1356, %v844
        %v1613 = vsub.f32 %v1357, %v845
        %v1614 = vsub.f32 %v1358, %v846
        %v1615 = vsub.f32 %v1359, %v847
        %v1616 = vsub.f32 %v1360, %v848
        %v1617 = vsub.f32 %v1361, %v849
        %v1618 = vsub.f32 %v1362, %v850
        %v1619 = vsub.f32 %v1363, %v851
        %v1620 = vsub.f32 %v1364, %v852
        %v1621 = vsub.f32 %v1365, %v853
        %v1622 = vsub.f32 %v1366, %v854
        %v1623 = vsub.f32 %v1367, %v855
        %v1624 = vsub.f32 %v1368, %v856
        %v1625 = vsub.f32 %v1369, %v857
        %v1626 = vsub.f32 %v1370, %v858
        %v1627 = vsub.f32 %v1371, %v859
        %v1628 = vsub.f32 %v1372, %v860
        %v1629 = vsub.f32 %v1373, %v861
        %v1630 = vsub.f32 %v1374, %v862
        %v1631 = vsub.f32 %v1375, %v863
        %v1632 = vsub.f32 %v1376, %v864
        %v1633 = vsub.f32 %v1377, %v865
        %v1634 = vsub.f32 %v1378, %v866
        %v1635 = vsub.f32 %v1379, %v867
        %v1636 = vsub.f32 %v1380, %v868
        %v1637 = vsub.f32 %v1381, %v869
        %v1638 = vsub.f32 %v1382, %v870
        %v1639 = vsub.f32 %v1383, %v871
        %v1640 = vsub.f32 %v1384, %v872
        %v1641 = vsub.f32 %v1385, %v873
        %v1642 = vsub.f32 %v1386, %v874
        %v1643 = vsub.f32 %v1387, %v875
        %v1644 = vsub.f32 %v1388, %v876
        %v1645 = vsub.f32 %v1389, %v877
        %v1646 = vsub.f32 %v1390, %v878
        %v1647 = vsub.f32 %v1391, %v879
        %v1648 = vsub.f32 %v1392, %v880
        %v1649 = vsub.f32 %v1393, %v881
        %v1650 = vsub.f32 %v1394, %v882
        %v1651 = vsub.f32 %v1395, %v883
        %v1652 = vsub.f32 %v1396, %v884
        %v1653 = vsub.f32 %v1397, %v885
        %v1654 = vsub.f32 %v1398, %v886
        %v1655 = vsub.f32 %v1399, %v887
        %v1656 = vsub.f32 %v1400, %v888
        %v1657 = vsub.f32 %v1401, %v889
        %v1658 = vsub.f32 %v1402, %v890
        %v1659 = vsub.f32 %v1403, %v891
        %v1660 = vsub.f32 %v1404, %v892
        %v1661 = vsub.f32 %v1405, %v893
        %v1662 = vsub.f32 %v1406, %v894
        %v1663 = vsub.f32 %v1407, %v895
        %v1664 = vsub.f32 %v1408, %v896
        %v1665 = vsub.f32 %v1409, %v897
        %v1666 = vsub.f32 %v1410, %v898
        %v1667 = vsub.f32 %v1411, %v899
        %v1668 = vsub.f32 %v1412, %v900
        %v1669 = vsub.f32 %v1413, %v901
        %v1670 = vsub.f32 %v1414, %v902
        %v1671 = vsub.f32 %v1415, %v903
        %v1672 = vsub.f32 %v1416, %v904
        %v1673 = vsub.f32 %v1417, %v905
        %v1674 = vsub.f32 %v1418, %v906
        %v1675 = vsub.f32 %v1419, %v907
        %v1676 = vsub.f32 %v1420, %v908
        %v1677 = vsub.f32 %v1421, %v909
        %v1678 = vsub.f32 %v1422, %v910
        %v1679 = vsub.f32 %v1423, %v911
        %v1680 = vsub.f32 %v1424, %v912
        %v1681 = vsub.f32 %v1425, %v913
        %v1682 = vsub.f32 %v1426, %v914
        %v1683 = vsub.f32 %v1427, %v915
        %v1684 = vsub.f32 %v1428, %v916
        %v1685 = vsub.f32 %v1429, %v917
        %v1686 = vsub.f32 %v1430, %v918
        %v1687 = vsub.f32 %v1431, %v919
        %v1688 = vsub.f32 %v1432, %v920
        %v1689 = vsub.f32 %v1433, %v921
        %v1690 = vsub.f32 %v1434, %v922
        %v1691 = vsub.f32 %v1435, %v923
        %v1692 = vsub.f32 %v1436, %v924
        %v1693 = vsub.f32 %v1437, %v925
        %v1694 = vsub.f32 %v1438, %v926
        %v1695 = vsub.f32 %v1439, %v927
        %v1696 = vsub.f32 %v1440, %v928
        %v1697 = vsub.f32 %v1441, %v929
        %v1698 = vsub.f32 %v1442, %v930
        %v1699 = vsub.f32 %v1443, %v931
        %v1700 = vsub.f32 %v1444, %v932
        %v1701 = vsub.f32 %v1445, %v933
        %v1702 = vsub.f32 %v1446, %v934
        %v1703 = vsub.f32 %v1447, %v935
        %v1704 = vsub.f32 %v1448, %v936
        %v1705 = vsub.f32 %v1449, %v937
        %v1706 = vsub.f32 %v1450, %v938
        %v1707 = vsub.f32 %v1451, %v939
        %v1708 = vsub.f32 %v1452, %v940
        %v1709 = vsub.f32 %v1453, %v941
        %v1710 = vsub.f32 %v1454, %v942
        %v1711 = vsub.f32 %v1455, %v943
        %v1712 = vsub.f32 %v1456, %v944
        %v1713 = vsub.f32 %v1457, %v945
        %v1714 = vsub.f32 %v1458, %v946
        %v1715 = vsub.f32 %v1459, %v947
        %v1716 = vsub.f32 %v1460, %v948
        %v1717 = vsub.f32 %v1461, %v949
        %v1718 = vsub.f32 %v1462, %v950
        %v1719 = vsub.f32 %v1463, %v951
        %v1720 = vsub.f32 %v1464, %v952
        %v1721 = vsub.f32 %v1465, %v953
        %v1722 = vsub.f32 %v1466, %v954
        %v1723 = vsub.f32 %v1467, %v955
        %v1724 = vsub.f32 %v1468, %v956
        %v1725 = vsub.f32 %v1469, %v957
        %v1726 = vsub.f32 %v1470, %v958
        %v1727 = vsub.f32 %v1471, %v959
        %v1728 = vsub.f32 %v1472, %v960
        %v1729 = vsub.f32 %v1473, %v961
        %v1730 = vsub.f32 %v1474, %v962
        %v1731 = vsub.f32 %v1475, %v963
        %v1732 = vsub.f32 %v1476, %v964
        %v1733 = vsub.f32 %v1477, %v965
        %v1734 = vsub.f32 %v1478, %v966
        %v1735 = vsub.f32 %v1479, %v967
        %v1736 = vsub.f32 %v1480, %v968
        %v1737 = vsub.f32 %v1481, %v969
        %v1738 = vsub.f32 %v1482, %v970
        %v1739 = vsub.f32 %v1483, %v971
        %v1740 = vsub.f32 %v1484, %v972
        %v1741 = vsub.f32 %v1485, %v973
        %v1742 = vsub.f32 %v1486, %v974
        %v1743 = vsub.f32 %v1487, %v975
        %v1744 = vsub.f32 %v1488, %v976
        %v1745 = vsub.f32 %v1489, %v977
        %v1746 = vsub.f32 %v1490, %v978
        %v1747 = vsub.f32 %v1491, %v979
        %v1748 = vsub.f32 %v1492, %v980
        %v1749 = vsub.f32 %v1493, %v981
        %v1750 = vsub.f32 %v1494, %v982
        %v1751 = vsub.f32 %v1495, %v983
        %v1752 = vsub.f32 %v1496, %v984
        %v1753 = vsub.f32 %v1497, %v985
        %v1754 = vsub.f32 %v1498, %v986
        %v1755 = vsub.f32 %v1499, %v987
        %v1756 = vsub.f32 %v1500, %v988
        %v1757 = vsub.f32 %v1501, %v989
        %v1758 = vsub.f32 %v1502, %v990
        %v1759 = vsub.f32 %v1503, %v991
        %v1760 = vsub.f32 %v1504, %v992
        %v1761 = vsub.f32 %v1505, %v993
        %v1762 = vsub.f32 %v1506, %v994
        %v1763 = vsub.f32 %v1507, %v995
        %v1764 = vsub.f32 %v1508, %v996
        %v1765 = vsub.f32 %v1509, %v997
        %v1766 = vsub.f32 %v1510, %v998
        %v1767 = vsub.f32 %v1511, %v999
        %v1768 = vsub.f32 %v1512, %v1000
        %v1769 = vsub.f32 %v1513, %v1001
        %v1770 = vsub.f32 %v1514, %v1002
        %v1771 = vsub.f32 %v1515, %v1003
        %v1772 = vsub.f32 %v1516, %v1004
        %v1773 = vsub.f32 %v1517, %v1005
        %v1774 = vsub.f32 %v1518, %v1006
        %v1775 = vsub.f32 %v1519, %v1007
        %v1776 = vsub.f32 %v1520, %v1008
        %v1777 = vsub.f32 %v1521, %v1009
        %v1778 = vsub.f32 %v1522, %v1010
        %v1779 = vsub.f32 %v1523, %v1011
        %v1780 = vsub.f32 %v1524, %v1012
        %v1781 = vsub.f32 %v1525, %v1013
        %v1782 = vsub.f32 %v1526, %v1014
        %v1783 = vsub.f32 %v1527, %v1015
        %v1784 = vsub.f32 %v1528, %v1016
        %v1785 = vsub.f32 %v1529, %v1017
        %v1786 = vsub.f32 %v1530, %v1018
        %v1787 = vsub.f32 %v1531, %v1019
        %v1788 = vsub.f32 %v1532, %v1020
        %v1789 = vsub.f32 %v1533, %v1021
        %v1790 = vsub.f32 %v1534, %v1022
        %v1791 = vsub.f32 %v1535, %v1023
        %v1792 = vsub.f32 %v1536, %v1024
        %v1793 = vsub.f32 %v1537, %v1025
        %v1794 = vsub.f32 %v1538, %v1026
        %v1795 = vsub.f32 %v1539, %v1027
        %v1796 = vsub.f32 %v1540, %v1028
        %v1797 = vsub.f32 %v1541, %v1029
        %v1798 = vsub.f32 %v1542, %v1030
        %v1799 = vsub.f32 %v1543, %v1031
        %v1800 = vsub.f32 %v1544, %v1032
        %v1801 = vsub.f32 %v1545, %v1033
        %v1802 = vsub.f32 %v1546, %v1034
        %v1803 = vsub.f32 %v1547, %v1035
        %v1804 = vsub.f32 %v1548, %v1036
        %v1805 = vsub.f32 %v1549, %v1037
        %v1806 = vsub.f32 %v1550, %v1038
        %v1807 = vsub.f32 %v1551, %v1039
        %v1808 = vsub.f32 %v1552, %v1040
        %v1809 = vsub.f32 %v1553, %v1041
        %1810 = vst [vmem:[%s265] sm:$0xff] %v1554
        %1811 = vst [vmem:[%s265 + $0x8] sm:$0xff] %v1555
        %1812 = vst [vmem:[%s265 + $0x10] sm:$0xff] %v1556
        %1813 = vst [vmem:[%s265 + $0x18] sm:$0xff] %v1557
        %1814 = vst [vmem:[%s265 + $0x20] sm:$0xff] %v1558
        %1815 = vst [vmem:[%s265 + $0x28] sm:$0xff] %v1559
        %1816 = vst [vmem:[%s265 + $0x30] sm:$0xff] %v1560
        %1817 = vst [vmem:[%s265 + $0x38] sm:$0xff] %v1561
        %1818 = vst [vmem:[%s265 + $0x40] sm:$0xff] %v1562
        %1819 = vst [vmem:[%s265 + $0x48] sm:$0xff] %v1563
        %1820 = vst [vmem:[%s265 + $0x50] sm:$0xff] %v1564
        %1821 = vst [vmem:[%s265 + $0x58] sm:$0xff] %v1565
        %1822 = vst [vmem:[%s265 + $0x60] sm:$0xff] %v1566
        %1823 = vst [vmem:[%s265 + $0x68] sm:$0xff] %v1567
        %1824 = vst [vmem:[%s265 + $0x70] sm:$0xff] %v1568
        %1825 = vst [vmem:[%s265 + $0x78] sm:$0xff] %v1569
        %1826 = vst [vmem:[%s265 + $0x80] sm:$0xff] %v1570
        %1827 = vst [vmem:[%s265 + $0x88] sm:$0xff] %v1571
        %1828 = vst [vmem:[%s265 + $0x90] sm:$0xff] %v1572
        %1829 = vst [vmem:[%s265 + $0x98] sm:$0xff] %v1573
        %1830 = vst [vmem:[%s265 + $0xa0] sm:$0xff] %v1574
        %1831 = vst [vmem:[%s265 + $0xa8] sm:$0xff] %v1575
        %1832 = vst [vmem:[%s265 + $0xb0] sm:$0xff] %v1576
        %1833 = vst [vmem:[%s265 + $0xb8] sm:$0xff] %v1577
        %1834 = vst [vmem:[%s265 + $0xc0] sm:$0xff] %v1578
        %1835 = vst [vmem:[%s265 + $0xc8] sm:$0xff] %v1579
        %1836 = vst [vmem:[%s265 + $0xd0] sm:$0xff] %v1580
        %1837 = vst [vmem:[%s265 + $0xd8] sm:$0xff] %v1581
        %1838 = vst [vmem:[%s265 + $0xe0] sm:$0xff] %v1582
        %1839 = vst [vmem:[%s265 + $0xe8] sm:$0xff] %v1583
        %1840 = vst [vmem:[%s265 + $0xf0] sm:$0xff] %v1584
        %1841 = vst [vmem:[%s265 + $0xf8] sm:$0xff] %v1585
        %1842 = vst [vmem:[%s265 + $0x100] sm:$0xff] %v1586
        %1843 = vst [vmem:[%s265 + $0x108] sm:$0xff] %v1587
        %1844 = vst [vmem:[%s265 + $0x110] sm:$0xff] %v1588
        %1845 = vst [vmem:[%s265 + $0x118] sm:$0xff] %v1589
        %1846 = vst [vmem:[%s265 + $0x120] sm:$0xff] %v1590
        %1847 = vst [vmem:[%s265 + $0x128] sm:$0xff] %v1591
        %1848 = vst [vmem:[%s265 + $0x130] sm:$0xff] %v1592
        %1849 = vst [vmem:[%s265 + $0x138] sm:$0xff] %v1593
        %1850 = vst [vmem:[%s265 + $0x140] sm:$0xff] %v1594
        %1851 = vst [vmem:[%s265 + $0x148] sm:$0xff] %v1595
        %1852 = vst [vmem:[%s265 + $0x150] sm:$0xff] %v1596
        %1853 = vst [vmem:[%s265 + $0x158] sm:$0xff] %v1597
        %1854 = vst [vmem:[%s265 + $0x160] sm:$0xff] %v1598
        %1855 = vst [vmem:[%s265 + $0x168] sm:$0xff] %v1599
        %1856 = vst [vmem:[%s265 + $0x170] sm:$0xff] %v1600
        %1857 = vst [vmem:[%s265 + $0x178] sm:$0xff] %v1601
        %1858 = vst [vmem:[%s265 + $0x180] sm:$0xff] %v1602
        %1859 = vst [vmem:[%s265 + $0x188] sm:$0xff] %v1603
        %1860 = vst [vmem:[%s265 + $0x190] sm:$0xff] %v1604
        %1861 = vst [vmem:[%s265 + $0x198] sm:$0xff] %v1605
        %1862 = vst [vmem:[%s265 + $0x1a0] sm:$0xff] %v1606
        %1863 = vst [vmem:[%s265 + $0x1a8] sm:$0xff] %v1607
        %1864 = vst [vmem:[%s265 + $0x1b0] sm:$0xff] %v1608
        %1865 = vst [vmem:[%s265 + $0x1b8] sm:$0xff] %v1609
        %1866 = vst [vmem:[%s265 + $0x1c0] sm:$0xff] %v1610
        %1867 = vst [vmem:[%s265 + $0x1c8] sm:$0xff] %v1611
        %1868 = vst [vmem:[%s265 + $0x1d0] sm:$0xff] %v1612
        %1869 = vst [vmem:[%s265 + $0x1d8] sm:$0xff] %v1613
        %1870 = vst [vmem:[%s265 + $0x1e0] sm:$0xff] %v1614
        %1871 = vst [vmem:[%s265 + $0x1e8] sm:$0xff] %v1615
        %1872 = vst [vmem:[%s265 + $0x1f0] sm:$0xff] %v1616
        %1873 = vst [vmem:[%s265 + $0x1f8] sm:$0xff] %v1617
        %1874 = vst [vmem:[%s265 + $0x200] sm:$0xff] %v1618
        %1875 = vst [vmem:[%s265 + $0x208] sm:$0xff] %v1619
        %1876 = vst [vmem:[%s265 + $0x210] sm:$0xff] %v1620
        %1877 = vst [vmem:[%s265 + $0x218] sm:$0xff] %v1621
        %1878 = vst [vmem:[%s265 + $0x220] sm:$0xff] %v1622
        %1879 = vst [vmem:[%s265 + $0x228] sm:$0xff] %v1623
        %1880 = vst [vmem:[%s265 + $0x230] sm:$0xff] %v1624
        %1881 = vst [vmem:[%s265 + $0x238] sm:$0xff] %v1625
        %1882 = vst [vmem:[%s265 + $0x240] sm:$0xff] %v1626
        %1883 = vst [vmem:[%s265 + $0x248] sm:$0xff] %v1627
        %1884 = vst [vmem:[%s265 + $0x250] sm:$0xff] %v1628
        %1885 = vst [vmem:[%s265 + $0x258] sm:$0xff] %v1629
        %1886 = vst [vmem:[%s265 + $0x260] sm:$0xff] %v1630
        %1887 = vst [vmem:[%s265 + $0x268] sm:$0xff] %v1631
        %1888 = vst [vmem:[%s265 + $0x270] sm:$0xff] %v1632
        %1889 = vst [vmem:[%s265 + $0x278] sm:$0xff] %v1633
        %1890 = vst [vmem:[%s265 + $0x280] sm:$0xff] %v1634
        %1891 = vst [vmem:[%s265 + $0x288] sm:$0xff] %v1635
        %1892 = vst [vmem:[%s265 + $0x290] sm:$0xff] %v1636
        %1893 = vst [vmem:[%s265 + $0x298] sm:$0xff] %v1637
        %1894 = vst [vmem:[%s265 + $0x2a0] sm:$0xff] %v1638
        %1895 = vst [vmem:[%s265 + $0x2a8] sm:$0xff] %v1639
        %1896 = vst [vmem:[%s265 + $0x2b0] sm:$0xff] %v1640
        %1897 = vst [vmem:[%s265 + $0x2b8] sm:$0xff] %v1641
        %1898 = vst [vmem:[%s265 + $0x2c0] sm:$0xff] %v1642
        %1899 = vst [vmem:[%s265 + $0x2c8] sm:$0xff] %v1643
        %1900 = vst [vmem:[%s265 + $0x2d0] sm:$0xff] %v1644
        %1901 = vst [vmem:[%s265 + $0x2d8] sm:$0xff] %v1645
        %1902 = vst [vmem:[%s265 + $0x2e0] sm:$0xff] %v1646
        %1903 = vst [vmem:[%s265 + $0x2e8] sm:$0xff] %v1647
        %1904 = vst [vmem:[%s265 + $0x2f0] sm:$0xff] %v1648
        %1905 = vst [vmem:[%s265 + $0x2f8] sm:$0xff] %v1649
        %1906 = vst [vmem:[%s265 + $0x300] sm:$0xff] %v1650
        %1907 = vst [vmem:[%s265 + $0x308] sm:$0xff] %v1651
        %1908 = vst [vmem:[%s265 + $0x310] sm:$0xff] %v1652
        %1909 = vst [vmem:[%s265 + $0x318] sm:$0xff] %v1653
        %1910 = vst [vmem:[%s265 + $0x320] sm:$0xff] %v1654
        %1911 = vst [vmem:[%s265 + $0x328] sm:$0xff] %v1655
        %1912 = vst [vmem:[%s265 + $0x330] sm:$0xff] %v1656
        %1913 = vst [vmem:[%s265 + $0x338] sm:$0xff] %v1657
        %1914 = vst [vmem:[%s265 + $0x340] sm:$0xff] %v1658
        %1915 = vst [vmem:[%s265 + $0x348] sm:$0xff] %v1659
        %1916 = vst [vmem:[%s265 + $0x350] sm:$0xff] %v1660
        %1917 = vst [vmem:[%s265 + $0x358] sm:$0xff] %v1661
        %1918 = vst [vmem:[%s265 + $0x360] sm:$0xff] %v1662
        %1919 = vst [vmem:[%s265 + $0x368] sm:$0xff] %v1663
        %1920 = vst [vmem:[%s265 + $0x370] sm:$0xff] %v1664
        %1921 = vst [vmem:[%s265 + $0x378] sm:$0xff] %v1665
        %1922 = vst [vmem:[%s265 + $0x380] sm:$0xff] %v1666
        %1923 = vst [vmem:[%s265 + $0x388] sm:$0xff] %v1667
        %1924 = vst [vmem:[%s265 + $0x390] sm:$0xff] %v1668
        %1925 = vst [vmem:[%s265 + $0x398] sm:$0xff] %v1669
        %1926 = vst [vmem:[%s265 + $0x3a0] sm:$0xff] %v1670
        %1927 = vst [vmem:[%s265 + $0x3a8] sm:$0xff] %v1671
        %1928 = vst [vmem:[%s265 + $0x3b0] sm:$0xff] %v1672
        %1929 = vst [vmem:[%s265 + $0x3b8] sm:$0xff] %v1673
        %1930 = vst [vmem:[%s265 + $0x3c0] sm:$0xff] %v1674
        %1931 = vst [vmem:[%s265 + $0x3c8] sm:$0xff] %v1675
        %1932 = vst [vmem:[%s265 + $0x3d0] sm:$0xff] %v1676
        %1933 = vst [vmem:[%s265 + $0x3d8] sm:$0xff] %v1677
        %1934 = vst [vmem:[%s265 + $0x3e0] sm:$0xff] %v1678
        %1935 = vst [vmem:[%s265 + $0x3e8] sm:$0xff] %v1679
        %1936 = vst [vmem:[%s265 + $0x3f0] sm:$0xff] %v1680
        %1937 = vst [vmem:[%s265 + $0x3f8] sm:$0xff] %v1681
        %1938 = vst [vmem:[%s265 + $0x400] sm:$0xff] %v1682
        %1939 = vst [vmem:[%s265 + $0x408] sm:$0xff] %v1683
        %1940 = vst [vmem:[%s265 + $0x410] sm:$0xff] %v1684
        %1941 = vst [vmem:[%s265 + $0x418] sm:$0xff] %v1685
        %1942 = vst [vmem:[%s265 + $0x420] sm:$0xff] %v1686
        %1943 = vst [vmem:[%s265 + $0x428] sm:$0xff] %v1687
        %1944 = vst [vmem:[%s265 + $0x430] sm:$0xff] %v1688
        %1945 = vst [vmem:[%s265 + $0x438] sm:$0xff] %v1689
        %1946 = vst [vmem:[%s265 + $0x440] sm:$0xff] %v1690
        %1947 = vst [vmem:[%s265 + $0x448] sm:$0xff] %v1691
        %1948 = vst [vmem:[%s265 + $0x450] sm:$0xff] %v1692
        %1949 = vst [vmem:[%s265 + $0x458] sm:$0xff] %v1693
        %1950 = vst [vmem:[%s265 + $0x460] sm:$0xff] %v1694
        %1951 = vst [vmem:[%s265 + $0x468] sm:$0xff] %v1695
        %1952 = vst [vmem:[%s265 + $0x470] sm:$0xff] %v1696
        %1953 = vst [vmem:[%s265 + $0x478] sm:$0xff] %v1697
        %1954 = vst [vmem:[%s265 + $0x480] sm:$0xff] %v1698
        %1955 = vst [vmem:[%s265 + $0x488] sm:$0xff] %v1699
        %1956 = vst [vmem:[%s265 + $0x490] sm:$0xff] %v1700
        %1957 = vst [vmem:[%s265 + $0x498] sm:$0xff] %v1701
        %1958 = vst [vmem:[%s265 + $0x4a0] sm:$0xff] %v1702
        %1959 = vst [vmem:[%s265 + $0x4a8] sm:$0xff] %v1703
        %1960 = vst [vmem:[%s265 + $0x4b0] sm:$0xff] %v1704
        %1961 = vst [vmem:[%s265 + $0x4b8] sm:$0xff] %v1705
        %1962 = vst [vmem:[%s265 + $0x4c0] sm:$0xff] %v1706
        %1963 = vst [vmem:[%s265 + $0x4c8] sm:$0xff] %v1707
        %1964 = vst [vmem:[%s265 + $0x4d0] sm:$0xff] %v1708
        %1965 = vst [vmem:[%s265 + $0x4d8] sm:$0xff] %v1709
        %1966 = vst [vmem:[%s265 + $0x4e0] sm:$0xff] %v1710
        %1967 = vst [vmem:[%s265 + $0x4e8] sm:$0xff] %v1711
        %1968 = vst [vmem:[%s265 + $0x4f0] sm:$0xff] %v1712
        %1969 = vst [vmem:[%s265 + $0x4f8] sm:$0xff] %v1713
        %1970 = vst [vmem:[%s265 + $0x500] sm:$0xff] %v1714
        %1971 = vst [vmem:[%s265 + $0x508] sm:$0xff] %v1715
        %1972 = vst [vmem:[%s265 + $0x510] sm:$0xff] %v1716
        %1973 = vst [vmem:[%s265 + $0x518] sm:$0xff] %v1717
        %1974 = vst [vmem:[%s265 + $0x520] sm:$0xff] %v1718
        %1975 = vst [vmem:[%s265 + $0x528] sm:$0xff] %v1719
        %1976 = vst [vmem:[%s265 + $0x530] sm:$0xff] %v1720
        %1977 = vst [vmem:[%s265 + $0x538] sm:$0xff] %v1721
        %1978 = vst [vmem:[%s265 + $0x540] sm:$0xff] %v1722
        %1979 = vst [vmem:[%s265 + $0x548] sm:$0xff] %v1723
        %1980 = vst [vmem:[%s265 + $0x550] sm:$0xff] %v1724
        %1981 = vst [vmem:[%s265 + $0x558] sm:$0xff] %v1725
        %1982 = vst [vmem:[%s265 + $0x560] sm:$0xff] %v1726
        %1983 = vst [vmem:[%s265 + $0x568] sm:$0xff] %v1727
        %1984 = vst [vmem:[%s265 + $0x570] sm:$0xff] %v1728
        %1985 = vst [vmem:[%s265 + $0x578] sm:$0xff] %v1729
        %1986 = vst [vmem:[%s265 + $0x580] sm:$0xff] %v1730
        %1987 = vst [vmem:[%s265 + $0x588] sm:$0xff] %v1731
        %1988 = vst [vmem:[%s265 + $0x590] sm:$0xff] %v1732
        %1989 = vst [vmem:[%s265 + $0x598] sm:$0xff] %v1733
        %1990 = vst [vmem:[%s265 + $0x5a0] sm:$0xff] %v1734
        %1991 = vst [vmem:[%s265 + $0x5a8] sm:$0xff] %v1735
        %1992 = vst [vmem:[%s265 + $0x5b0] sm:$0xff] %v1736
        %1993 = vst [vmem:[%s265 + $0x5b8] sm:$0xff] %v1737
        %1994 = vst [vmem:[%s265 + $0x5c0] sm:$0xff] %v1738
        %1995 = vst [vmem:[%s265 + $0x5c8] sm:$0xff] %v1739
        %1996 = vst [vmem:[%s265 + $0x5d0] sm:$0xff] %v1740
        %1997 = vst [vmem:[%s265 + $0x5d8] sm:$0xff] %v1741
        %1998 = vst [vmem:[%s265 + $0x5e0] sm:$0xff] %v1742
        %1999 = vst [vmem:[%s265 + $0x5e8] sm:$0xff] %v1743
        %2000 = vst [vmem:[%s265 + $0x5f0] sm:$0xff] %v1744
        %2001 = vst [vmem:[%s265 + $0x5f8] sm:$0xff] %v1745
        %2002 = vst [vmem:[%s265 + $0x600] sm:$0xff] %v1746
        %2003 = vst [vmem:[%s265 + $0x608] sm:$0xff] %v1747
        %2004 = vst [vmem:[%s265 + $0x610] sm:$0xff] %v1748
        %2005 = vst [vmem:[%s265 + $0x618] sm:$0xff] %v1749
        %2006 = vst [vmem:[%s265 + $0x620] sm:$0xff] %v1750
        %2007 = vst [vmem:[%s265 + $0x628] sm:$0xff] %v1751
        %2008 = vst [vmem:[%s265 + $0x630] sm:$0xff] %v1752
        %2009 = vst [vmem:[%s265 + $0x638] sm:$0xff] %v1753
        %2010 = vst [vmem:[%s265 + $0x640] sm:$0xff] %v1754
        %2011 = vst [vmem:[%s265 + $0x648] sm:$0xff] %v1755
        %2012 = vst [vmem:[%s265 + $0x650] sm:$0xff] %v1756
        %2013 = vst [vmem:[%s265 + $0x658] sm:$0xff] %v1757
        %2014 = vst [vmem:[%s265 + $0x660] sm:$0xff] %v1758
        %2015 = vst [vmem:[%s265 + $0x668] sm:$0xff] %v1759
        %2016 = vst [vmem:[%s265 + $0x670] sm:$0xff] %v1760
        %2017 = vst [vmem:[%s265 + $0x678] sm:$0xff] %v1761
        %2018 = vst [vmem:[%s265 + $0x680] sm:$0xff] %v1762
        %2019 = vst [vmem:[%s265 + $0x688] sm:$0xff] %v1763
        %2020 = vst [vmem:[%s265 + $0x690] sm:$0xff] %v1764
        %2021 = vst [vmem:[%s265 + $0x698] sm:$0xff] %v1765
        %2022 = vst [vmem:[%s265 + $0x6a0] sm:$0xff] %v1766
        %2023 = vst [vmem:[%s265 + $0x6a8] sm:$0xff] %v1767
        %2024 = vst [vmem:[%s265 + $0x6b0] sm:$0xff] %v1768
        %2025 = vst [vmem:[%s265 + $0x6b8] sm:$0xff] %v1769
        %2026 = vst [vmem:[%s265 + $0x6c0] sm:$0xff] %v1770
        %2027 = vst [vmem:[%s265 + $0x6c8] sm:$0xff] %v1771
        %2028 = vst [vmem:[%s265 + $0x6d0] sm:$0xff] %v1772
        %2029 = vst [vmem:[%s265 + $0x6d8] sm:$0xff] %v1773
        %2030 = vst [vmem:[%s265 + $0x6e0] sm:$0xff] %v1774
        %2031 = vst [vmem:[%s265 + $0x6e8] sm:$0xff] %v1775
        %2032 = vst [vmem:[%s265 + $0x6f0] sm:$0xff] %v1776
        %2033 = vst [vmem:[%s265 + $0x6f8] sm:$0xff] %v1777
        %2034 = vst [vmem:[%s265 + $0x700] sm:$0xff] %v1778
        %2035 = vst [vmem:[%s265 + $0x708] sm:$0xff] %v1779
        %2036 = vst [vmem:[%s265 + $0x710] sm:$0xff] %v1780
        %2037 = vst [vmem:[%s265 + $0x718] sm:$0xff] %v1781
        %2038 = vst [vmem:[%s265 + $0x720] sm:$0xff] %v1782
        %2039 = vst [vmem:[%s265 + $0x728] sm:$0xff] %v1783
        %2040 = vst [vmem:[%s265 + $0x730] sm:$0xff] %v1784
        %2041 = vst [vmem:[%s265 + $0x738] sm:$0xff] %v1785
        %2042 = vst [vmem:[%s265 + $0x740] sm:$0xff] %v1786
        %2043 = vst [vmem:[%s265 + $0x748] sm:$0xff] %v1787
        %2044 = vst [vmem:[%s265 + $0x750] sm:$0xff] %v1788
        %2045 = vst [vmem:[%s265 + $0x758] sm:$0xff] %v1789
        %2046 = vst [vmem:[%s265 + $0x760] sm:$0xff] %v1790
        %2047 = vst [vmem:[%s265 + $0x768] sm:$0xff] %v1791
        %2048 = vst [vmem:[%s265 + $0x770] sm:$0xff] %v1792
        %2049 = vst [vmem:[%s265 + $0x778] sm:$0xff] %v1793
        %2050 = vst [vmem:[%s265 + $0x780] sm:$0xff] %v1794
        %2051 = vst [vmem:[%s265 + $0x788] sm:$0xff] %v1795
        %2052 = vst [vmem:[%s265 + $0x790] sm:$0xff] %v1796
        %2053 = vst [vmem:[%s265 + $0x798] sm:$0xff] %v1797
        %2054 = vst [vmem:[%s265 + $0x7a0] sm:$0xff] %v1798
        %2055 = vst [vmem:[%s265 + $0x7a8] sm:$0xff] %v1799
        %2056 = vst [vmem:[%s265 + $0x7b0] sm:$0xff] %v1800
        %2057 = vst [vmem:[%s265 + $0x7b8] sm:$0xff] %v1801
        %2058 = vst [vmem:[%s265 + $0x7c0] sm:$0xff] %v1802
        %2059 = vst [vmem:[%s265 + $0x7c8] sm:$0xff] %v1803
        %2060 = vst [vmem:[%s265 + $0x7d0] sm:$0xff] %v1804
        %2061 = vst [vmem:[%s265 + $0x7d8] sm:$0xff] %v1805
        %2062 = vst [vmem:[%s265 + $0x7e0] sm:$0xff] %v1806
        %2063 = vst [vmem:[%s265 + $0x7e8] sm:$0xff] %v1807
        %2064 = vst [vmem:[%s265 + $0x7f0] sm:$0xff] %v1808
        %2065 = vst [vmem:[%s265 + $0x7f8] sm:$0xff] %v1809
        %s2066 = sand.u32 %s105, 1
        %s2067 = scalar_lea.sflag [#allocation4], %s2066
        %s2068 = sand.u32 %s105, 1
        %s2069 = smul.addr %s2068, 2048
        %s2070 = scalar_lea.vmem [#allocation7], %s2069
        %s2071 = sand.u32 %s133, 1
        %s2072 = scalar_lea.sflag [#allocation9], %s2071
        %s2073 = sand.u32 %s133, 1
        %s2074 = smul.addr %s2073, 2048
        %s2075 = scalar_lea.vmem [#allocation8], %s2074
        // Predicated region
        $region37: #{tpu_custom_call.1} parent=27 // pred_check
          %p2076 = pneg %p115
        $region38: #{tpu_custom_call.1} parent=27 // pred_check_branch
          %2078 = sbr.rel (%p2076) target = $region40
        $region39: #{tpu_custom_call.1} parent=27 // pred_region
          %s2079 = smul.u32 32, %s31
          %s2080 = smul.u32 8, %s32
          %s2082 = ssub.s32 32768, 32768
          %2083 = vsyncadd %s2067, %s2082
          %s2084 = smul.addr %s2079, 8
          %s2085 = sadd.s32 %s2080, %s2084
          %s2086 = smul.addr %s2085, 128
          %s2087 = scalar_lea.hbm %s2, %s2086
          %s2088 = sshll.u32 %s2070, 4
          %s2089 = int_to_ptr.vmem [resolvable:$true] %s2088
          %2094 = dma.vmem_to_hbm [thread:$0]  %s2089, 32768, %s2087, %s2067, 1024, 1024, 64
        $region40: #{tpu_custom_call.1} parent=27 // pred_fallthru
          _
        // Predicated region
        $region41: #{tpu_custom_call.1} parent=27 // pred_check
          %p2095 = pneg %p143
        $region42: #{tpu_custom_call.1} parent=27 // pred_check_branch
          %2097 = sbr.rel (%p2095) target = $region44
        $region43: #{tpu_custom_call.1} parent=27 // pred_region
          %s2098 = smul.u32 32, %s31
          %s2099 = smul.u32 8, %s32
          %s2101 = ssub.s32 32768, 32768
          %2102 = vsyncadd %s2072, %s2101
          %s2103 = smul.addr %s2098, 8
          %s2104 = sadd.s32 %s2099, %s2103
          %s2105 = smul.addr %s2104, 128
          %s2106 = scalar_lea.hbm %s3, %s2105
          %s2107 = sshll.u32 %s2075, 4
          %s2108 = int_to_ptr.vmem [resolvable:$true] %s2107
          %2113 = dma.vmem_to_hbm [thread:$0]  %s2108, 32768, %s2106, %s2072, 1024, 1024, 64
        $region44: #{tpu_custom_call.1} parent=27 // pred_fallthru
          _
      $region28: #{tpu_custom_call.1} parent=5 // pred_fallthru
        _
      %p2114 = scmp.le.s32.totalorder 2, %s22
      // Predicated region
      $region45: #{tpu_custom_call.1} parent=5 // pred_check
        %p2115 = pneg %p2114
      $region46: #{tpu_custom_call.1} parent=5 // pred_check_branch
        %2117 = sbr.rel (%p2115) target = $region48
      $region47: #{tpu_custom_call.1} parent=5 // pred_region
        %s2118 = ssub.s32 %s22, 2
        // Predicated region
        $region49: #{tpu_custom_call.1} parent=47 // pred_check
          %p2119 = pneg %p121
        $region50: #{tpu_custom_call.1} parent=47 // pred_check_branch
          %2121 = sbr.rel (%p2119) target = $region52
        $region51: #{tpu_custom_call.1} parent=47 // pred_region
          %s2122 = sand.u32 %s106, 1
          %s2123 = scalar_lea.sflag [#allocation4], %s2122
          %s2124 = sand.u32 %s106, 1
          %s2125 = smul.addr %s2124, 2048
          %s2126 = scalar_lea.vmem [#allocation7], %s2125
          %2127 = dma.done %s2123, 32768
        $region52: #{tpu_custom_call.1} parent=47 // pred_fallthru
          _
        // Predicated region
        $region53: #{tpu_custom_call.1} parent=47 // pred_check
          %p2128 = pneg %p149
        $region54: #{tpu_custom_call.1} parent=47 // pred_check_branch
          %2130 = sbr.rel (%p2128) target = $region56
        $region55: #{tpu_custom_call.1} parent=47 // pred_region
          %s2131 = sand.u32 %s134, 1
          %s2132 = scalar_lea.sflag [#allocation9], %s2131
          %s2133 = sand.u32 %s134, 1
          %s2134 = smul.addr %s2133, 2048
          %s2135 = scalar_lea.vmem [#allocation8], %s2134
          %2136 = dma.done %s2132, 32768
        $region56: #{tpu_custom_call.1} parent=47 // pred_fallthru
          _
      $region48: #{tpu_custom_call.1} parent=5 // pred_fallthru
        _
    $region6: #{tpu_custom_call.1} parent=1 // loop_footer
      %s26 = sadd.s32 1, %s22
    $region7: #{tpu_custom_call.1} parent=1 // loop_footer_branch
      %21 = sbr.rel target = $region3
    $region8: #{tpu_custom_call.1} parent=1 // loop_exit
      _
    %2137 = vsyncpa [#allocation3], 1
    %s2138 = scalar_lea.sflag [#allocation3], 1
    %2139 = vsyncpa %s2138, 1
    %2140 = vsyncpa [#allocation6], 1
    %s2141 = scalar_lea.sflag [#allocation6], 1
    %2142 = vsyncpa %s2141, 1
    %2143 = vsyncpa [#allocation4], 1
    %s2144 = scalar_lea.sflag [#allocation4], 1
    %2145 = vsyncpa %s2144, 1
    %2146 = vsyncpa [#allocation9], 1
    %s2147 = scalar_lea.sflag [#allocation9], 1
    %2148 = vsyncpa %s2147, 1

</llo_original>
